<compile_context>
chip_gen: v7x
topology: tpu7x:2x2x1
jax: 0.10.0
libtpu: 0.0.40
codegen_flags: <defaults>
</compile_context>

<pallas_src>
import functools

import jax
import jax.numpy as jnp
from jax.experimental import pallas as pl
from jax.experimental.pallas import tpu as pltpu


_NEG = -1e30  # finite "-inf": masked / initial entries never produce NaNs.


def _round_up(x, m):
    return (x + m - 1) // m * m


def _proj_ce_kernel(tok_ref, emb_hbm, w_ref, lab_ref, loss_ref,
                    h_scr, m_scr, l_scr, t_scr, sems,
                    *, tile_n, tile_v, v_true):
    """Grid = (row tiles [parallel], vocab tiles [arbitrary / reduction])."""
    r = pl.program_id(0)          # row-tile index
    v = pl.program_id(1)          # vocab-tile index (innermost, reduction)
    n_vtiles = pl.num_programs(1)

    @pl.when(v == 0)
    def _init_row_tile():
        # ---- fused embedding gather -------------------------------------
        # DMA the tile_n needed rows of the embedding table directly from
        # HBM into VMEM scratch.  emb is kept f32 so every row is a
        # sublane-aligned strided DMA.
        # TODO(synk): for a bf16 table, pack 2xbf16 -> u32 before the gather.
        base = r * tile_n
        for i in range(tile_n):                       # small, fully unrolled
            tok = tok_ref[base + i]                   # SMEM scalar read
            pltpu.make_async_copy(
                emb_hbm.at[pl.ds(tok, 1), :],
                h_scr.at[pl.ds(i, 1), :],
                sems.at[i],
            ).start()
        for i in range(tile_n):
            # src index is irrelevant for wait(); only sem / size matter.
            pltpu.make_async_copy(
                emb_hbm.at[pl.ds(0, 1), :],
                h_scr.at[pl.ds(i, 1), :],
                sems.at[i],
            ).wait()
        # ---- online-logsumexp state for this row tile --------------------
        m_scr[...] = jnp.full_like(m_scr, _NEG)
        l_scr[...] = jnp.zeros_like(l_scr)
        t_scr[...] = jnp.zeros_like(t_scr)

    # (tile_n, tile_v) logits slab on the MXU: bf16 operands, f32 accumulate.
    h = h_scr[...].astype(jnp.bfloat16)
    logits = jnp.dot(h, w_ref[...], preferred_element_type=jnp.float32)

    # Global vocab index of every column in this tile.
    col = jax.lax.broadcasted_iota(jnp.int32, (tile_n, tile_v), 1) + v * tile_v
    if v_true % tile_v != 0:
        # Mask padded vocab columns out of the softmax.
        logits = jnp.where(col < v_true, logits, _NEG)

    # Online (flash-style) logsumexp update, all in f32.
    m_prev = m_scr[...]
    m_new = jnp.maximum(m_prev, jnp.max(logits, axis=-1, keepdims=True))
    alpha = jnp.exp(m_prev - m_new)
    l_scr[...] = l_scr[...] * alpha + jnp.sum(
        jnp.exp(logits - m_new), axis=-1, keepdims=True)
    m_scr[...] = m_new

    # Accumulate the target logit when the label falls inside this window.
    hit = col == lab_ref[...]                          # (tile_n, 1) broadcast
    t_scr[...] += jnp.sum(jnp.where(hit, logits, 0.0), axis=-1, keepdims=True)

    @pl.when(v == n_vtiles - 1)
    def _finalize_row_tile():
        lse = m_scr[...] + jnp.log(l_scr[...])
        loss_ref[...] = lse - t_scr[...]               # per-row NLL


def fused_ar_cross_entropy(emb, w_out, x, *, tile_n=None, tile_v=None):
    """AutoregressiveWrapper.forward: mean next-token cross entropy.

    emb   : (V, D) f32   embedding table (stays in HBM; rows DMA-gathered)
    w_out : (D, V) bf16  output projection ("LM head") weight
    x     : (B, T) int32 token ids
    """
    x_in, labels = x[:, :-1], x[:, 1:]
    b, t = x_in.shape
    n = b * t
    v_true, d = emb.shape
    assert w_out.shape == (d, v_true)

    # MXU-friendly tiles: rows up to 128 (multiple of 8), vocab multiple of
    # 128 (256 preferred for v6e/v7x MXUs).  D (contraction) is kept whole.
    if tile_n is None:
        tile_n = min(128, _round_up(n, 8))
    if tile_v is None:
        tile_v = min(256, _round_up(v_true, 128))
    n_pad = _round_up(n, tile_n)
    v_pad = _round_up(v_true, tile_v)

    tokens = jnp.pad(x_in.reshape(-1).astype(jnp.int32), (0, n_pad - n))
    labels_p = jnp.pad(labels.reshape(-1).astype(jnp.int32),
                       (0, n_pad - n)).reshape(n_pad, 1)
    w_p = w_out if v_pad == v_true else jnp.pad(
        w_out, ((0, 0), (0, v_pad - v_true)))

    grid = (n_pad // tile_n, v_pad // tile_v)

    kernel = functools.partial(_proj_ce_kernel, tile_n=tile_n, tile_v=tile_v,
                               v_true=v_true)

    per_row_nll = pl.pallas_call(
        kernel,
        out_shape=jax.ShapeDtypeStruct((n_pad, 1), jnp.float32),
        grid_spec=pltpu.PrefetchScalarGridSpec(
            num_scalar_prefetch=1,                                  # tokens -> SMEM
            grid=grid,
            in_specs=[
                pl.BlockSpec(memory_space=pl.ANY),                  # emb, raw HBM
                pl.BlockSpec((d, tile_v), lambda r, v, tok: (0, v)),   # W vocab tile
                pl.BlockSpec((tile_n, 1), lambda r, v, tok: (r, 0)),   # labels (tiny)
            ],
            out_specs=pl.BlockSpec((tile_n, 1), lambda r, v, tok: (r, 0)),
            scratch_shapes=[
                pltpu.VMEM((tile_n, d), jnp.float32),   # gathered embeddings
                pltpu.VMEM((tile_n, 1), jnp.float32),   # running max  m
                pltpu.VMEM((tile_n, 1), jnp.float32),   # running sum  l
                pltpu.VMEM((tile_n, 1), jnp.float32),   # target logit
                pltpu.SemaphoreType.DMA((tile_n,)),     # one sem per gathered row
            ],
        ),
        compiler_params=pltpu.CompilerParams(
            # Row tiles are independent -> shard across the 2 TCs on v7x;
            # the vocab axis is the sequential online-softmax reduction.
            dimension_semantics=("parallel", "arbitrary"),
            # Explicit budget (re-derive for v7x's 64 MiB physical VMEM).
            vmem_limit_bytes=64 * 1024 * 1024,
        ),
    )(tokens, emb, w_p, labels_p)

    # Mean over the true (unpadded) B*(T-1) positions.
    return jnp.sum(per_row_nll[:n, 0]) / n


def _reference_loss(emb, w_out, x):
    """Pure-JAX reference mirroring the kernel's bf16-matmul / f32-softmax."""
    x_in, labels = x[:, :-1], x[:, 1:]
    h = emb[x_in].astype(jnp.bfloat16).astype(jnp.float32)     # (B, T-1, D)
    logits = jnp.einsum("bnd,dv->bnv", h, w_out.astype(jnp.float32))
    logp = jax.nn.log_softmax(logits, axis=-1)
    nll = -jnp.take_along_axis(logp, labels[..., None], axis=-1)[..., 0]
    return jnp.mean(nll)


if __name__ == "__main__":
    # Small shapes; V=1000 / N=14 deliberately exercise both the vocab- and
    # row-padding mask paths (V_pad=1024, N_pad=16).
    VOCAB, DIM, B, T = 1000, 128, 2, 8          # seq_len = 7 after the shift

    key = jax.random.PRNGKey(0)
    k_emb, k_w, k_tok = jax.random.split(key, 3)
    emb = jax.random.normal(k_emb, (VOCAB, DIM), jnp.float32) * 0.02
    w_out = (jax.random.normal(k_w, (DIM, VOCAB), jnp.float32) * 0.02
             ).astype(jnp.bfloat16)
    x = jax.random.randint(k_tok, (B, T), 0, VOCAB, dtype=jnp.int32)

    loss = jax.block_until_ready(fused_ar_cross_entropy(emb, w_out, x))
    ref = jax.block_until_ready(_reference_loss(emb, w_out, x))
    assert jnp.allclose(loss, ref, atol=1e-3, rtol=1e-3), (loss, ref)

    print("KERNEL_OK")
</pallas_src>

<mosaic_0001>
module attributes {stable_mosaic.version = 11 : i64} {
  func.func @_proj_ce_kernel(%arg0: i32, %arg1: i32, %arg2: memref<16xi32, #tpu.memory_space<smem>>, %arg3: memref<1000x128xf32, #tpu.memory_space<any>>, %arg4: memref<128x256xbf16, #tpu.memory_space<vmem>>, %arg5: memref<16x1xi32, #tpu.memory_space<vmem>>, %arg6: memref<16x1xf32, #tpu.memory_space<vmem>>, %arg7: memref<16x128xf32, #tpu.memory_space<vmem>>, %arg8: memref<16x1xf32, #tpu.memory_space<vmem>>, %arg9: memref<16x1xf32, #tpu.memory_space<vmem>>, %arg10: memref<16x1xf32, #tpu.memory_space<vmem>>, %arg11: memref<16x!tpu.dma_semaphore, #tpu.memory_space<semaphore_mem>>) attributes {dimension_semantics = [#tpu.dimension_semantics<parallel>, #tpu.dimension_semantics<arbitrary>], iteration_bounds = array<i64: 1, 4>, scalar_prefetch = 1 : i64, scratch_operands = 5 : i64, tpu.core_type = #tpu.core_type<tc>, window_params = [{}, {transform_indices = @transform_1, window_bounds = array<i64: 128, 256>}, {transform_indices = @transform_2, window_bounds = array<i64: 16, 1>}, {transform_indices = @transform_3, window_bounds = array<i64: 16, 1>}]} {
    %c0_i32 = arith.constant 0 : i32
    %0 = arith.cmpi eq, %arg1, %c0_i32 : i32
    %1 = arith.extui %0 : i1 to i32
    %c0_i32_0 = arith.constant 0 : i32
    %2 = arith.cmpi ne, %1, %c0_i32_0 : i32
    scf.if %2 {
      %c16_i32 = arith.constant 16 : i32
      %44 = arith.muli %arg0, %c16_i32 : i32
      %c0_i32_24 = arith.constant 0 : i32
      %45 = arith.addi %44, %c0_i32_24 : i32
      %46 = arith.index_cast %45 : i32 to index
      %47 = memref.load %arg2[%46] : memref<16xi32, #tpu.memory_space<smem>>
      %c0_i32_25 = arith.constant 0 : i32
      %c0_i32_26 = arith.constant 0 : i32
      %48 = tpu.memref_slice %arg3[%47, %c0_i32_26] : memref<1000x128xf32, #tpu.memory_space<any>> -> memref<1x128xf32, #tpu.memory_space<any>>
      %c0_i32_27 = arith.constant 0 : i32
      %c0_i32_28 = arith.constant 0 : i32
      %49 = tpu.memref_slice %arg7[%c0_i32_27, %c0_i32_28] : memref<16x128xf32, #tpu.memory_space<vmem>> -> memref<1x128xf32, #tpu.memory_space<vmem>>
      %50 = tpu.memref_slice %arg11[%c0_i32_25] : memref<16x!tpu.dma_semaphore, #tpu.memory_space<semaphore_mem>> -> memref<1x!tpu.dma_semaphore, #tpu.memory_space<semaphore_mem>>
      %51 = tpu.memref_squeeze %50 : memref<1x!tpu.dma_semaphore, #tpu.memory_space<semaphore_mem>> -> memref<!tpu.dma_semaphore, #tpu.memory_space<semaphore_mem>>
      tpu.enqueue_dma source(%48 : memref<1x128xf32, #tpu.memory_space<any>>) target(%49 : memref<1x128xf32, #tpu.memory_space<vmem>>) target_semaphore(%51 : memref<!tpu.dma_semaphore, #tpu.memory_space<semaphore_mem>>)
      %c1_i32 = arith.constant 1 : i32
      %52 = arith.addi %44, %c1_i32 : i32
      %53 = arith.index_cast %52 : i32 to index
      %54 = memref.load %arg2[%53] : memref<16xi32, #tpu.memory_space<smem>>
      %c1_i32_29 = arith.constant 1 : i32
      %c0_i32_30 = arith.constant 0 : i32
      %55 = tpu.memref_slice %arg3[%54, %c0_i32_30] : memref<1000x128xf32, #tpu.memory_space<any>> -> memref<1x128xf32, #tpu.memory_space<any>>
      %c1_i32_31 = arith.constant 1 : i32
      %c0_i32_32 = arith.constant 0 : i32
      %56 = tpu.memref_slice %arg7[%c1_i32_31, %c0_i32_32] : memref<16x128xf32, #tpu.memory_space<vmem>> -> memref<1x128xf32, #tpu.memory_space<vmem>>
      %57 = tpu.memref_slice %arg11[%c1_i32_29] : memref<16x!tpu.dma_semaphore, #tpu.memory_space<semaphore_mem>> -> memref<1x!tpu.dma_semaphore, #tpu.memory_space<semaphore_mem>>
      %58 = tpu.memref_squeeze %57 : memref<1x!tpu.dma_semaphore, #tpu.memory_space<semaphore_mem>> -> memref<!tpu.dma_semaphore, #tpu.memory_space<semaphore_mem>>
      tpu.enqueue_dma source(%55 : memref<1x128xf32, #tpu.memory_space<any>>) target(%56 : memref<1x128xf32, #tpu.memory_space<vmem>>) target_semaphore(%58 : memref<!tpu.dma_semaphore, #tpu.memory_space<semaphore_mem>>)
      %c2_i32 = arith.constant 2 : i32
      %59 = arith.addi %44, %c2_i32 : i32
      %60 = arith.index_cast %59 : i32 to index
      %61 = memref.load %arg2[%60] : memref<16xi32, #tpu.memory_space<smem>>
      %c2_i32_33 = arith.constant 2 : i32
      %c0_i32_34 = arith.constant 0 : i32
      %62 = tpu.memref_slice %arg3[%61, %c0_i32_34] : memref<1000x128xf32, #tpu.memory_space<any>> -> memref<1x128xf32, #tpu.memory_space<any>>
      %c2_i32_35 = arith.constant 2 : i32
      %c0_i32_36 = arith.constant 0 : i32
      %63 = tpu.memref_slice %arg7[%c2_i32_35, %c0_i32_36] : memref<16x128xf32, #tpu.memory_space<vmem>> -> memref<1x128xf32, #tpu.memory_space<vmem>>
      %64 = tpu.memref_slice %arg11[%c2_i32_33] : memref<16x!tpu.dma_semaphore, #tpu.memory_space<semaphore_mem>> -> memref<1x!tpu.dma_semaphore, #tpu.memory_space<semaphore_mem>>
      %65 = tpu.memref_squeeze %64 : memref<1x!tpu.dma_semaphore, #tpu.memory_space<semaphore_mem>> -> memref<!tpu.dma_semaphore, #tpu.memory_space<semaphore_mem>>
      tpu.enqueue_dma source(%62 : memref<1x128xf32, #tpu.memory_space<any>>) target(%63 : memref<1x128xf32, #tpu.memory_space<vmem>>) target_semaphore(%65 : memref<!tpu.dma_semaphore, #tpu.memory_space<semaphore_mem>>)
      %c3_i32_37 = arith.constant 3 : i32
      %66 = arith.addi %44, %c3_i32_37 : i32
      %67 = arith.index_cast %66 : i32 to index
      %68 = memref.load %arg2[%67] : memref<16xi32, #tpu.memory_space<smem>>
      %c3_i32_38 = arith.constant 3 : i32
      %c0_i32_39 = arith.constant 0 : i32
      %69 = tpu.memref_slice %arg3[%68, %c0_i32_39] : memref<1000x128xf32, #tpu.memory_space<any>> -> memref<1x128xf32, #tpu.memory_space<any>>
      %c3_i32_40 = arith.constant 3 : i32
      %c0_i32_41 = arith.constant 0 : i32
      %70 = tpu.memref_slice %arg7[%c3_i32_40, %c0_i32_41] : memref<16x128xf32, #tpu.memory_space<vmem>> -> memref<1x128xf32, #tpu.memory_space<vmem>>
      %71 = tpu.memref_slice %arg11[%c3_i32_38] : memref<16x!tpu.dma_semaphore, #tpu.memory_space<semaphore_mem>> -> memref<1x!tpu.dma_semaphore, #tpu.memory_space<semaphore_mem>>
      %72 = tpu.memref_squeeze %71 : memref<1x!tpu.dma_semaphore, #tpu.memory_space<semaphore_mem>> -> memref<!tpu.dma_semaphore, #tpu.memory_space<semaphore_mem>>
      tpu.enqueue_dma source(%69 : memref<1x128xf32, #tpu.memory_space<any>>) target(%70 : memref<1x128xf32, #tpu.memory_space<vmem>>) target_semaphore(%72 : memref<!tpu.dma_semaphore, #tpu.memory_space<semaphore_mem>>)
      %c4_i32 = arith.constant 4 : i32
      %73 = arith.addi %44, %c4_i32 : i32
      %74 = arith.index_cast %73 : i32 to index
      %75 = memref.load %arg2[%74] : memref<16xi32, #tpu.memory_space<smem>>
      %c4_i32_42 = arith.constant 4 : i32
      %c0_i32_43 = arith.constant 0 : i32
      %76 = tpu.memref_slice %arg3[%75, %c0_i32_43] : memref<1000x128xf32, #tpu.memory_space<any>> -> memref<1x128xf32, #tpu.memory_space<any>>
      %c4_i32_44 = arith.constant 4 : i32
      %c0_i32_45 = arith.constant 0 : i32
      %77 = tpu.memref_slice %arg7[%c4_i32_44, %c0_i32_45] : memref<16x128xf32, #tpu.memory_space<vmem>> -> memref<1x128xf32, #tpu.memory_space<vmem>>
      %78 = tpu.memref_slice %arg11[%c4_i32_42] : memref<16x!tpu.dma_semaphore, #tpu.memory_space<semaphore_mem>> -> memref<1x!tpu.dma_semaphore, #tpu.memory_space<semaphore_mem>>
      %79 = tpu.memref_squeeze %78 : memref<1x!tpu.dma_semaphore, #tpu.memory_space<semaphore_mem>> -> memref<!tpu.dma_semaphore, #tpu.memory_space<semaphore_mem>>
      tpu.enqueue_dma source(%76 : memref<1x128xf32, #tpu.memory_space<any>>) target(%77 : memref<1x128xf32, #tpu.memory_space<vmem>>) target_semaphore(%79 : memref<!tpu.dma_semaphore, #tpu.memory_space<semaphore_mem>>)
      %c5_i32 = arith.constant 5 : i32
      %80 = arith.addi %44, %c5_i32 : i32
      %81 = arith.index_cast %80 : i32 to index
      %82 = memref.load %arg2[%81] : memref<16xi32, #tpu.memory_space<smem>>
      %c5_i32_46 = arith.constant 5 : i32
      %c0_i32_47 = arith.constant 0 : i32
      %83 = tpu.memref_slice %arg3[%82, %c0_i32_47] : memref<1000x128xf32, #tpu.memory_space<any>> -> memref<1x128xf32, #tpu.memory_space<any>>
      %c5_i32_48 = arith.constant 5 : i32
      %c0_i32_49 = arith.constant 0 : i32
      %84 = tpu.memref_slice %arg7[%c5_i32_48, %c0_i32_49] : memref<16x128xf32, #tpu.memory_space<vmem>> -> memref<1x128xf32, #tpu.memory_space<vmem>>
      %85 = tpu.memref_slice %arg11[%c5_i32_46] : memref<16x!tpu.dma_semaphore, #tpu.memory_space<semaphore_mem>> -> memref<1x!tpu.dma_semaphore, #tpu.memory_space<semaphore_mem>>
      %86 = tpu.memref_squeeze %85 : memref<1x!tpu.dma_semaphore, #tpu.memory_space<semaphore_mem>> -> memref<!tpu.dma_semaphore, #tpu.memory_space<semaphore_mem>>
      tpu.enqueue_dma source(%83 : memref<1x128xf32, #tpu.memory_space<any>>) target(%84 : memref<1x128xf32, #tpu.memory_space<vmem>>) target_semaphore(%86 : memref<!tpu.dma_semaphore, #tpu.memory_space<semaphore_mem>>)
      %c6_i32 = arith.constant 6 : i32
      %87 = arith.addi %44, %c6_i32 : i32
      %88 = arith.index_cast %87 : i32 to index
      %89 = memref.load %arg2[%88] : memref<16xi32, #tpu.memory_space<smem>>
      %c6_i32_50 = arith.constant 6 : i32
      %c0_i32_51 = arith.constant 0 : i32
      %90 = tpu.memref_slice %arg3[%89, %c0_i32_51] : memref<1000x128xf32, #tpu.memory_space<any>> -> memref<1x128xf32, #tpu.memory_space<any>>
      %c6_i32_52 = arith.constant 6 : i32
      %c0_i32_53 = arith.constant 0 : i32
      %91 = tpu.memref_slice %arg7[%c6_i32_52, %c0_i32_53] : memref<16x128xf32, #tpu.memory_space<vmem>> -> memref<1x128xf32, #tpu.memory_space<vmem>>
      %92 = tpu.memref_slice %arg11[%c6_i32_50] : memref<16x!tpu.dma_semaphore, #tpu.memory_space<semaphore_mem>> -> memref<1x!tpu.dma_semaphore, #tpu.memory_space<semaphore_mem>>
      %93 = tpu.memref_squeeze %92 : memref<1x!tpu.dma_semaphore, #tpu.memory_space<semaphore_mem>> -> memref<!tpu.dma_semaphore, #tpu.memory_space<semaphore_mem>>
      tpu.enqueue_dma source(%90 : memref<1x128xf32, #tpu.memory_space<any>>) target(%91 : memref<1x128xf32, #tpu.memory_space<vmem>>) target_semaphore(%93 : memref<!tpu.dma_semaphore, #tpu.memory_space<semaphore_mem>>)
      %c7_i32 = arith.constant 7 : i32
      %94 = arith.addi %44, %c7_i32 : i32
      %95 = arith.index_cast %94 : i32 to index
      %96 = memref.load %arg2[%95] : memref<16xi32, #tpu.memory_space<smem>>
      %c7_i32_54 = arith.constant 7 : i32
      %c0_i32_55 = arith.constant 0 : i32
      %97 = tpu.memref_slice %arg3[%96, %c0_i32_55] : memref<1000x128xf32, #tpu.memory_space<any>> -> memref<1x128xf32, #tpu.memory_space<any>>
      %c7_i32_56 = arith.constant 7 : i32
      %c0_i32_57 = arith.constant 0 : i32
      %98 = tpu.memref_slice %arg7[%c7_i32_56, %c0_i32_57] : memref<16x128xf32, #tpu.memory_space<vmem>> -> memref<1x128xf32, #tpu.memory_space<vmem>>
      %99 = tpu.memref_slice %arg11[%c7_i32_54] : memref<16x!tpu.dma_semaphore, #tpu.memory_space<semaphore_mem>> -> memref<1x!tpu.dma_semaphore, #tpu.memory_space<semaphore_mem>>
      %100 = tpu.memref_squeeze %99 : memref<1x!tpu.dma_semaphore, #tpu.memory_space<semaphore_mem>> -> memref<!tpu.dma_semaphore, #tpu.memory_space<semaphore_mem>>
      tpu.enqueue_dma source(%97 : memref<1x128xf32, #tpu.memory_space<any>>) target(%98 : memref<1x128xf32, #tpu.memory_space<vmem>>) target_semaphore(%100 : memref<!tpu.dma_semaphore, #tpu.memory_space<semaphore_mem>>)
      %c8_i32 = arith.constant 8 : i32
      %101 = arith.addi %44, %c8_i32 : i32
      %102 = arith.index_cast %101 : i32 to index
      %103 = memref.load %arg2[%102] : memref<16xi32, #tpu.memory_space<smem>>
      %c8_i32_58 = arith.constant 8 : i32
      %c0_i32_59 = arith.constant 0 : i32
      %104 = tpu.memref_slice %arg3[%103, %c0_i32_59] : memref<1000x128xf32, #tpu.memory_space<any>> -> memref<1x128xf32, #tpu.memory_space<any>>
      %c8_i32_60 = arith.constant 8 : i32
      %c0_i32_61 = arith.constant 0 : i32
      %105 = tpu.memref_slice %arg7[%c8_i32_60, %c0_i32_61] : memref<16x128xf32, #tpu.memory_space<vmem>> -> memref<1x128xf32, #tpu.memory_space<vmem>>
      %106 = tpu.memref_slice %arg11[%c8_i32_58] : memref<16x!tpu.dma_semaphore, #tpu.memory_space<semaphore_mem>> -> memref<1x!tpu.dma_semaphore, #tpu.memory_space<semaphore_mem>>
      %107 = tpu.memref_squeeze %106 : memref<1x!tpu.dma_semaphore, #tpu.memory_space<semaphore_mem>> -> memref<!tpu.dma_semaphore, #tpu.memory_space<semaphore_mem>>
      tpu.enqueue_dma source(%104 : memref<1x128xf32, #tpu.memory_space<any>>) target(%105 : memref<1x128xf32, #tpu.memory_space<vmem>>) target_semaphore(%107 : memref<!tpu.dma_semaphore, #tpu.memory_space<semaphore_mem>>)
      %c9_i32 = arith.constant 9 : i32
      %108 = arith.addi %44, %c9_i32 : i32
      %109 = arith.index_cast %108 : i32 to index
      %110 = memref.load %arg2[%109] : memref<16xi32, #tpu.memory_space<smem>>
      %c9_i32_62 = arith.constant 9 : i32
      %c0_i32_63 = arith.constant 0 : i32
      %111 = tpu.memref_slice %arg3[%110, %c0_i32_63] : memref<1000x128xf32, #tpu.memory_space<any>> -> memref<1x128xf32, #tpu.memory_space<any>>
      %c9_i32_64 = arith.constant 9 : i32
      %c0_i32_65 = arith.constant 0 : i32
      %112 = tpu.memref_slice %arg7[%c9_i32_64, %c0_i32_65] : memref<16x128xf32, #tpu.memory_space<vmem>> -> memref<1x128xf32, #tpu.memory_space<vmem>>
      %113 = tpu.memref_slice %arg11[%c9_i32_62] : memref<16x!tpu.dma_semaphore, #tpu.memory_space<semaphore_mem>> -> memref<1x!tpu.dma_semaphore, #tpu.memory_space<semaphore_mem>>
      %114 = tpu.memref_squeeze %113 : memref<1x!tpu.dma_semaphore, #tpu.memory_space<semaphore_mem>> -> memref<!tpu.dma_semaphore, #tpu.memory_space<semaphore_mem>>
      tpu.enqueue_dma source(%111 : memref<1x128xf32, #tpu.memory_space<any>>) target(%112 : memref<1x128xf32, #tpu.memory_space<vmem>>) target_semaphore(%114 : memref<!tpu.dma_semaphore, #tpu.memory_space<semaphore_mem>>)
      %c10_i32 = arith.constant 10 : i32
      %115 = arith.addi %44, %c10_i32 : i32
      %116 = arith.index_cast %115 : i32 to index
      %117 = memref.load %arg2[%116] : memref<16xi32, #tpu.memory_space<smem>>
      %c10_i32_66 = arith.constant 10 : i32
      %c0_i32_67 = arith.constant 0 : i32
      %118 = tpu.memref_slice %arg3[%117, %c0_i32_67] : memref<1000x128xf32, #tpu.memory_space<any>> -> memref<1x128xf32, #tpu.memory_space<any>>
      %c10_i32_68 = arith.constant 10 : i32
      %c0_i32_69 = arith.constant 0 : i32
      %119 = tpu.memref_slice %arg7[%c10_i32_68, %c0_i32_69] : memref<16x128xf32, #tpu.memory_space<vmem>> -> memref<1x128xf32, #tpu.memory_space<vmem>>
      %120 = tpu.memref_slice %arg11[%c10_i32_66] : memref<16x!tpu.dma_semaphore, #tpu.memory_space<semaphore_mem>> -> memref<1x!tpu.dma_semaphore, #tpu.memory_space<semaphore_mem>>
      %121 = tpu.memref_squeeze %120 : memref<1x!tpu.dma_semaphore, #tpu.memory_space<semaphore_mem>> -> memref<!tpu.dma_semaphore, #tpu.memory_space<semaphore_mem>>
      tpu.enqueue_dma source(%118 : memref<1x128xf32, #tpu.memory_space<any>>) target(%119 : memref<1x128xf32, #tpu.memory_space<vmem>>) target_semaphore(%121 : memref<!tpu.dma_semaphore, #tpu.memory_space<semaphore_mem>>)
      %c11_i32 = arith.constant 11 : i32
      %122 = arith.addi %44, %c11_i32 : i32
      %123 = arith.index_cast %122 : i32 to index
      %124 = memref.load %arg2[%123] : memref<16xi32, #tpu.memory_space<smem>>
      %c11_i32_70 = arith.constant 11 : i32
      %c0_i32_71 = arith.constant 0 : i32
      %125 = tpu.memref_slice %arg3[%124, %c0_i32_71] : memref<1000x128xf32, #tpu.memory_space<any>> -> memref<1x128xf32, #tpu.memory_space<any>>
      %c11_i32_72 = arith.constant 11 : i32
      %c0_i32_73 = arith.constant 0 : i32
      %126 = tpu.memref_slice %arg7[%c11_i32_72, %c0_i32_73] : memref<16x128xf32, #tpu.memory_space<vmem>> -> memref<1x128xf32, #tpu.memory_space<vmem>>
      %127 = tpu.memref_slice %arg11[%c11_i32_70] : memref<16x!tpu.dma_semaphore, #tpu.memory_space<semaphore_mem>> -> memref<1x!tpu.dma_semaphore, #tpu.memory_space<semaphore_mem>>
      %128 = tpu.memref_squeeze %127 : memref<1x!tpu.dma_semaphore, #tpu.memory_space<semaphore_mem>> -> memref<!tpu.dma_semaphore, #tpu.memory_space<semaphore_mem>>
      tpu.enqueue_dma source(%125 : memref<1x128xf32, #tpu.memory_space<any>>) target(%126 : memref<1x128xf32, #tpu.memory_space<vmem>>) target_semaphore(%128 : memref<!tpu.dma_semaphore, #tpu.memory_space<semaphore_mem>>)
      %c12_i32 = arith.constant 12 : i32
      %129 = arith.addi %44, %c12_i32 : i32
      %130 = arith.index_cast %129 : i32 to index
      %131 = memref.load %arg2[%130] : memref<16xi32, #tpu.memory_space<smem>>
      %c12_i32_74 = arith.constant 12 : i32
      %c0_i32_75 = arith.constant 0 : i32
      %132 = tpu.memref_slice %arg3[%131, %c0_i32_75] : memref<1000x128xf32, #tpu.memory_space<any>> -> memref<1x128xf32, #tpu.memory_space<any>>
      %c12_i32_76 = arith.constant 12 : i32
      %c0_i32_77 = arith.constant 0 : i32
      %133 = tpu.memref_slice %arg7[%c12_i32_76, %c0_i32_77] : memref<16x128xf32, #tpu.memory_space<vmem>> -> memref<1x128xf32, #tpu.memory_space<vmem>>
      %134 = tpu.memref_slice %arg11[%c12_i32_74] : memref<16x!tpu.dma_semaphore, #tpu.memory_space<semaphore_mem>> -> memref<1x!tpu.dma_semaphore, #tpu.memory_space<semaphore_mem>>
      %135 = tpu.memref_squeeze %134 : memref<1x!tpu.dma_semaphore, #tpu.memory_space<semaphore_mem>> -> memref<!tpu.dma_semaphore, #tpu.memory_space<semaphore_mem>>
      tpu.enqueue_dma source(%132 : memref<1x128xf32, #tpu.memory_space<any>>) target(%133 : memref<1x128xf32, #tpu.memory_space<vmem>>) target_semaphore(%135 : memref<!tpu.dma_semaphore, #tpu.memory_space<semaphore_mem>>)
      %c13_i32 = arith.constant 13 : i32
      %136 = arith.addi %44, %c13_i32 : i32
      %137 = arith.index_cast %136 : i32 to index
      %138 = memref.load %arg2[%137] : memref<16xi32, #tpu.memory_space<smem>>
      %c13_i32_78 = arith.constant 13 : i32
      %c0_i32_79 = arith.constant 0 : i32
      %139 = tpu.memref_slice %arg3[%138, %c0_i32_79] : memref<1000x128xf32, #tpu.memory_space<any>> -> memref<1x128xf32, #tpu.memory_space<any>>
      %c13_i32_80 = arith.constant 13 : i32
      %c0_i32_81 = arith.constant 0 : i32
      %140 = tpu.memref_slice %arg7[%c13_i32_80, %c0_i32_81] : memref<16x128xf32, #tpu.memory_space<vmem>> -> memref<1x128xf32, #tpu.memory_space<vmem>>
      %141 = tpu.memref_slice %arg11[%c13_i32_78] : memref<16x!tpu.dma_semaphore, #tpu.memory_space<semaphore_mem>> -> memref<1x!tpu.dma_semaphore, #tpu.memory_space<semaphore_mem>>
      %142 = tpu.memref_squeeze %141 : memref<1x!tpu.dma_semaphore, #tpu.memory_space<semaphore_mem>> -> memref<!tpu.dma_semaphore, #tpu.memory_space<semaphore_mem>>
      tpu.enqueue_dma source(%139 : memref<1x128xf32, #tpu.memory_space<any>>) target(%140 : memref<1x128xf32, #tpu.memory_space<vmem>>) target_semaphore(%142 : memref<!tpu.dma_semaphore, #tpu.memory_space<semaphore_mem>>)
      %c14_i32 = arith.constant 14 : i32
      %143 = arith.addi %44, %c14_i32 : i32
      %144 = arith.index_cast %143 : i32 to index
      %145 = memref.load %arg2[%144] : memref<16xi32, #tpu.memory_space<smem>>
      %c14_i32_82 = arith.constant 14 : i32
      %c0_i32_83 = arith.constant 0 : i32
      %146 = tpu.memref_slice %arg3[%145, %c0_i32_83] : memref<1000x128xf32, #tpu.memory_space<any>> -> memref<1x128xf32, #tpu.memory_space<any>>
      %c14_i32_84 = arith.constant 14 : i32
      %c0_i32_85 = arith.constant 0 : i32
      %147 = tpu.memref_slice %arg7[%c14_i32_84, %c0_i32_85] : memref<16x128xf32, #tpu.memory_space<vmem>> -> memref<1x128xf32, #tpu.memory_space<vmem>>
      %148 = tpu.memref_slice %arg11[%c14_i32_82] : memref<16x!tpu.dma_semaphore, #tpu.memory_space<semaphore_mem>> -> memref<1x!tpu.dma_semaphore, #tpu.memory_space<semaphore_mem>>
      %149 = tpu.memref_squeeze %148 : memref<1x!tpu.dma_semaphore, #tpu.memory_space<semaphore_mem>> -> memref<!tpu.dma_semaphore, #tpu.memory_space<semaphore_mem>>
      tpu.enqueue_dma source(%146 : memref<1x128xf32, #tpu.memory_space<any>>) target(%147 : memref<1x128xf32, #tpu.memory_space<vmem>>) target_semaphore(%149 : memref<!tpu.dma_semaphore, #tpu.memory_space<semaphore_mem>>)
      %c15_i32 = arith.constant 15 : i32
      %150 = arith.addi %44, %c15_i32 : i32
      %151 = arith.index_cast %150 : i32 to index
      %152 = memref.load %arg2[%151] : memref<16xi32, #tpu.memory_space<smem>>
      %c15_i32_86 = arith.constant 15 : i32
      %c0_i32_87 = arith.constant 0 : i32
      %153 = tpu.memref_slice %arg3[%152, %c0_i32_87] : memref<1000x128xf32, #tpu.memory_space<any>> -> memref<1x128xf32, #tpu.memory_space<any>>
      %c15_i32_88 = arith.constant 15 : i32
      %c0_i32_89 = arith.constant 0 : i32
      %154 = tpu.memref_slice %arg7[%c15_i32_88, %c0_i32_89] : memref<16x128xf32, #tpu.memory_space<vmem>> -> memref<1x128xf32, #tpu.memory_space<vmem>>
      %155 = tpu.memref_slice %arg11[%c15_i32_86] : memref<16x!tpu.dma_semaphore, #tpu.memory_space<semaphore_mem>> -> memref<1x!tpu.dma_semaphore, #tpu.memory_space<semaphore_mem>>
      %156 = tpu.memref_squeeze %155 : memref<1x!tpu.dma_semaphore, #tpu.memory_space<semaphore_mem>> -> memref<!tpu.dma_semaphore, #tpu.memory_space<semaphore_mem>>
      tpu.enqueue_dma source(%153 : memref<1x128xf32, #tpu.memory_space<any>>) target(%154 : memref<1x128xf32, #tpu.memory_space<vmem>>) target_semaphore(%156 : memref<!tpu.dma_semaphore, #tpu.memory_space<semaphore_mem>>)
      %c0_i32_90 = arith.constant 0 : i32
      %c0_i32_91 = arith.constant 0 : i32
      %c0_i32_92 = arith.constant 0 : i32
      %157 = tpu.memref_slice %arg3[%c0_i32_91, %c0_i32_92] : memref<1000x128xf32, #tpu.memory_space<any>> -> memref<1x128xf32, #tpu.memory_space<any>>
      %c0_i32_93 = arith.constant 0 : i32
      %c0_i32_94 = arith.constant 0 : i32
      %158 = tpu.memref_slice %arg7[%c0_i32_93, %c0_i32_94] : memref<16x128xf32, #tpu.memory_space<vmem>> -> memref<1x128xf32, #tpu.memory_space<vmem>>
      %159 = tpu.memref_slice %arg11[%c0_i32_90] : memref<16x!tpu.dma_semaphore, #tpu.memory_space<semaphore_mem>> -> memref<1x!tpu.dma_semaphore, #tpu.memory_space<semaphore_mem>>
      %160 = tpu.memref_squeeze %159 : memref<1x!tpu.dma_semaphore, #tpu.memory_space<semaphore_mem>> -> memref<!tpu.dma_semaphore, #tpu.memory_space<semaphore_mem>>
      tpu.wait_dma2 semaphore(%160 : memref<!tpu.dma_semaphore, #tpu.memory_space<semaphore_mem>>) src(%157 : memref<1x128xf32, #tpu.memory_space<any>>) dst(%158 : memref<1x128xf32, #tpu.memory_space<vmem>>)
      %c1_i32_95 = arith.constant 1 : i32
      %c0_i32_96 = arith.constant 0 : i32
      %c0_i32_97 = arith.constant 0 : i32
      %161 = tpu.memref_slice %arg3[%c0_i32_96, %c0_i32_97] : memref<1000x128xf32, #tpu.memory_space<any>> -> memref<1x128xf32, #tpu.memory_space<any>>
      %c1_i32_98 = arith.constant 1 : i32
      %c0_i32_99 = arith.constant 0 : i32
      %162 = tpu.memref_slice %arg7[%c1_i32_98, %c0_i32_99] : memref<16x128xf32, #tpu.memory_space<vmem>> -> memref<1x128xf32, #tpu.memory_space<vmem>>
      %163 = tpu.memref_slice %arg11[%c1_i32_95] : memref<16x!tpu.dma_semaphore, #tpu.memory_space<semaphore_mem>> -> memref<1x!tpu.dma_semaphore, #tpu.memory_space<semaphore_mem>>
      %164 = tpu.memref_squeeze %163 : memref<1x!tpu.dma_semaphore, #tpu.memory_space<semaphore_mem>> -> memref<!tpu.dma_semaphore, #tpu.memory_space<semaphore_mem>>
      tpu.wait_dma2 semaphore(%164 : memref<!tpu.dma_semaphore, #tpu.memory_space<semaphore_mem>>) src(%161 : memref<1x128xf32, #tpu.memory_space<any>>) dst(%162 : memref<1x128xf32, #tpu.memory_space<vmem>>)
      %c2_i32_100 = arith.constant 2 : i32
      %c0_i32_101 = arith.constant 0 : i32
      %c0_i32_102 = arith.constant 0 : i32
      %165 = tpu.memref_slice %arg3[%c0_i32_101, %c0_i32_102] : memref<1000x128xf32, #tpu.memory_space<any>> -> memref<1x128xf32, #tpu.memory_space<any>>
      %c2_i32_103 = arith.constant 2 : i32
      %c0_i32_104 = arith.constant 0 : i32
      %166 = tpu.memref_slice %arg7[%c2_i32_103, %c0_i32_104] : memref<16x128xf32, #tpu.memory_space<vmem>> -> memref<1x128xf32, #tpu.memory_space<vmem>>
      %167 = tpu.memref_slice %arg11[%c2_i32_100] : memref<16x!tpu.dma_semaphore, #tpu.memory_space<semaphore_mem>> -> memref<1x!tpu.dma_semaphore, #tpu.memory_space<semaphore_mem>>
      %168 = tpu.memref_squeeze %167 : memref<1x!tpu.dma_semaphore, #tpu.memory_space<semaphore_mem>> -> memref<!tpu.dma_semaphore, #tpu.memory_space<semaphore_mem>>
      tpu.wait_dma2 semaphore(%168 : memref<!tpu.dma_semaphore, #tpu.memory_space<semaphore_mem>>) src(%165 : memref<1x128xf32, #tpu.memory_space<any>>) dst(%166 : memref<1x128xf32, #tpu.memory_space<vmem>>)
      %c3_i32_105 = arith.constant 3 : i32
      %c0_i32_106 = arith.constant 0 : i32
      %c0_i32_107 = arith.constant 0 : i32
      %169 = tpu.memref_slice %arg3[%c0_i32_106, %c0_i32_107] : memref<1000x128xf32, #tpu.memory_space<any>> -> memref<1x128xf32, #tpu.memory_space<any>>
      %c3_i32_108 = arith.constant 3 : i32
      %c0_i32_109 = arith.constant 0 : i32
      %170 = tpu.memref_slice %arg7[%c3_i32_108, %c0_i32_109] : memref<16x128xf32, #tpu.memory_space<vmem>> -> memref<1x128xf32, #tpu.memory_space<vmem>>
      %171 = tpu.memref_slice %arg11[%c3_i32_105] : memref<16x!tpu.dma_semaphore, #tpu.memory_space<semaphore_mem>> -> memref<1x!tpu.dma_semaphore, #tpu.memory_space<semaphore_mem>>
      %172 = tpu.memref_squeeze %171 : memref<1x!tpu.dma_semaphore, #tpu.memory_space<semaphore_mem>> -> memref<!tpu.dma_semaphore, #tpu.memory_space<semaphore_mem>>
      tpu.wait_dma2 semaphore(%172 : memref<!tpu.dma_semaphore, #tpu.memory_space<semaphore_mem>>) src(%169 : memref<1x128xf32, #tpu.memory_space<any>>) dst(%170 : memref<1x128xf32, #tpu.memory_space<vmem>>)
      %c4_i32_110 = arith.constant 4 : i32
      %c0_i32_111 = arith.constant 0 : i32
      %c0_i32_112 = arith.constant 0 : i32
      %173 = tpu.memref_slice %arg3[%c0_i32_111, %c0_i32_112] : memref<1000x128xf32, #tpu.memory_space<any>> -> memref<1x128xf32, #tpu.memory_space<any>>
      %c4_i32_113 = arith.constant 4 : i32
      %c0_i32_114 = arith.constant 0 : i32
      %174 = tpu.memref_slice %arg7[%c4_i32_113, %c0_i32_114] : memref<16x128xf32, #tpu.memory_space<vmem>> -> memref<1x128xf32, #tpu.memory_space<vmem>>
      %175 = tpu.memref_slice %arg11[%c4_i32_110] : memref<16x!tpu.dma_semaphore, #tpu.memory_space<semaphore_mem>> -> memref<1x!tpu.dma_semaphore, #tpu.memory_space<semaphore_mem>>
      %176 = tpu.memref_squeeze %175 : memref<1x!tpu.dma_semaphore, #tpu.memory_space<semaphore_mem>> -> memref<!tpu.dma_semaphore, #tpu.memory_space<semaphore_mem>>
      tpu.wait_dma2 semaphore(%176 : memref<!tpu.dma_semaphore, #tpu.memory_space<semaphore_mem>>) src(%173 : memref<1x128xf32, #tpu.memory_space<any>>) dst(%174 : memref<1x128xf32, #tpu.memory_space<vmem>>)
      %c5_i32_115 = arith.constant 5 : i32
      %c0_i32_116 = arith.constant 0 : i32
      %c0_i32_117 = arith.constant 0 : i32
      %177 = tpu.memref_slice %arg3[%c0_i32_116, %c0_i32_117] : memref<1000x128xf32, #tpu.memory_space<any>> -> memref<1x128xf32, #tpu.memory_space<any>>
      %c5_i32_118 = arith.constant 5 : i32
      %c0_i32_119 = arith.constant 0 : i32
      %178 = tpu.memref_slice %arg7[%c5_i32_118, %c0_i32_119] : memref<16x128xf32, #tpu.memory_space<vmem>> -> memref<1x128xf32, #tpu.memory_space<vmem>>
      %179 = tpu.memref_slice %arg11[%c5_i32_115] : memref<16x!tpu.dma_semaphore, #tpu.memory_space<semaphore_mem>> -> memref<1x!tpu.dma_semaphore, #tpu.memory_space<semaphore_mem>>
      %180 = tpu.memref_squeeze %179 : memref<1x!tpu.dma_semaphore, #tpu.memory_space<semaphore_mem>> -> memref<!tpu.dma_semaphore, #tpu.memory_space<semaphore_mem>>
      tpu.wait_dma2 semaphore(%180 : memref<!tpu.dma_semaphore, #tpu.memory_space<semaphore_mem>>) src(%177 : memref<1x128xf32, #tpu.memory_space<any>>) dst(%178 : memref<1x128xf32, #tpu.memory_space<vmem>>)
      %c6_i32_120 = arith.constant 6 : i32
      %c0_i32_121 = arith.constant 0 : i32
      %c0_i32_122 = arith.constant 0 : i32
      %181 = tpu.memref_slice %arg3[%c0_i32_121, %c0_i32_122] : memref<1000x128xf32, #tpu.memory_space<any>> -> memref<1x128xf32, #tpu.memory_space<any>>
      %c6_i32_123 = arith.constant 6 : i32
      %c0_i32_124 = arith.constant 0 : i32
      %182 = tpu.memref_slice %arg7[%c6_i32_123, %c0_i32_124] : memref<16x128xf32, #tpu.memory_space<vmem>> -> memref<1x128xf32, #tpu.memory_space<vmem>>
      %183 = tpu.memref_slice %arg11[%c6_i32_120] : memref<16x!tpu.dma_semaphore, #tpu.memory_space<semaphore_mem>> -> memref<1x!tpu.dma_semaphore, #tpu.memory_space<semaphore_mem>>
      %184 = tpu.memref_squeeze %183 : memref<1x!tpu.dma_semaphore, #tpu.memory_space<semaphore_mem>> -> memref<!tpu.dma_semaphore, #tpu.memory_space<semaphore_mem>>
      tpu.wait_dma2 semaphore(%184 : memref<!tpu.dma_semaphore, #tpu.memory_space<semaphore_mem>>) src(%181 : memref<1x128xf32, #tpu.memory_space<any>>) dst(%182 : memref<1x128xf32, #tpu.memory_space<vmem>>)
      %c7_i32_125 = arith.constant 7 : i32
      %c0_i32_126 = arith.constant 0 : i32
      %c0_i32_127 = arith.constant 0 : i32
      %185 = tpu.memref_slice %arg3[%c0_i32_126, %c0_i32_127] : memref<1000x128xf32, #tpu.memory_space<any>> -> memref<1x128xf32, #tpu.memory_space<any>>
      %c7_i32_128 = arith.constant 7 : i32
      %c0_i32_129 = arith.constant 0 : i32
      %186 = tpu.memref_slice %arg7[%c7_i32_128, %c0_i32_129] : memref<16x128xf32, #tpu.memory_space<vmem>> -> memref<1x128xf32, #tpu.memory_space<vmem>>
      %187 = tpu.memref_slice %arg11[%c7_i32_125] : memref<16x!tpu.dma_semaphore, #tpu.memory_space<semaphore_mem>> -> memref<1x!tpu.dma_semaphore, #tpu.memory_space<semaphore_mem>>
      %188 = tpu.memref_squeeze %187 : memref<1x!tpu.dma_semaphore, #tpu.memory_space<semaphore_mem>> -> memref<!tpu.dma_semaphore, #tpu.memory_space<semaphore_mem>>
      tpu.wait_dma2 semaphore(%188 : memref<!tpu.dma_semaphore, #tpu.memory_space<semaphore_mem>>) src(%185 : memref<1x128xf32, #tpu.memory_space<any>>) dst(%186 : memref<1x128xf32, #tpu.memory_space<vmem>>)
      %c8_i32_130 = arith.constant 8 : i32
      %c0_i32_131 = arith.constant 0 : i32
      %c0_i32_132 = arith.constant 0 : i32
      %189 = tpu.memref_slice %arg3[%c0_i32_131, %c0_i32_132] : memref<1000x128xf32, #tpu.memory_space<any>> -> memref<1x128xf32, #tpu.memory_space<any>>
      %c8_i32_133 = arith.constant 8 : i32
      %c0_i32_134 = arith.constant 0 : i32
      %190 = tpu.memref_slice %arg7[%c8_i32_133, %c0_i32_134] : memref<16x128xf32, #tpu.memory_space<vmem>> -> memref<1x128xf32, #tpu.memory_space<vmem>>
      %191 = tpu.memref_slice %arg11[%c8_i32_130] : memref<16x!tpu.dma_semaphore, #tpu.memory_space<semaphore_mem>> -> memref<1x!tpu.dma_semaphore, #tpu.memory_space<semaphore_mem>>
      %192 = tpu.memref_squeeze %191 : memref<1x!tpu.dma_semaphore, #tpu.memory_space<semaphore_mem>> -> memref<!tpu.dma_semaphore, #tpu.memory_space<semaphore_mem>>
      tpu.wait_dma2 semaphore(%192 : memref<!tpu.dma_semaphore, #tpu.memory_space<semaphore_mem>>) src(%189 : memref<1x128xf32, #tpu.memory_space<any>>) dst(%190 : memref<1x128xf32, #tpu.memory_space<vmem>>)
      %c9_i32_135 = arith.constant 9 : i32
      %c0_i32_136 = arith.constant 0 : i32
      %c0_i32_137 = arith.constant 0 : i32
      %193 = tpu.memref_slice %arg3[%c0_i32_136, %c0_i32_137] : memref<1000x128xf32, #tpu.memory_space<any>> -> memref<1x128xf32, #tpu.memory_space<any>>
      %c9_i32_138 = arith.constant 9 : i32
      %c0_i32_139 = arith.constant 0 : i32
      %194 = tpu.memref_slice %arg7[%c9_i32_138, %c0_i32_139] : memref<16x128xf32, #tpu.memory_space<vmem>> -> memref<1x128xf32, #tpu.memory_space<vmem>>
      %195 = tpu.memref_slice %arg11[%c9_i32_135] : memref<16x!tpu.dma_semaphore, #tpu.memory_space<semaphore_mem>> -> memref<1x!tpu.dma_semaphore, #tpu.memory_space<semaphore_mem>>
      %196 = tpu.memref_squeeze %195 : memref<1x!tpu.dma_semaphore, #tpu.memory_space<semaphore_mem>> -> memref<!tpu.dma_semaphore, #tpu.memory_space<semaphore_mem>>
      tpu.wait_dma2 semaphore(%196 : memref<!tpu.dma_semaphore, #tpu.memory_space<semaphore_mem>>) src(%193 : memref<1x128xf32, #tpu.memory_space<any>>) dst(%194 : memref<1x128xf32, #tpu.memory_space<vmem>>)
      %c10_i32_140 = arith.constant 10 : i32
      %c0_i32_141 = arith.constant 0 : i32
      %c0_i32_142 = arith.constant 0 : i32
      %197 = tpu.memref_slice %arg3[%c0_i32_141, %c0_i32_142] : memref<1000x128xf32, #tpu.memory_space<any>> -> memref<1x128xf32, #tpu.memory_space<any>>
      %c10_i32_143 = arith.constant 10 : i32
      %c0_i32_144 = arith.constant 0 : i32
      %198 = tpu.memref_slice %arg7[%c10_i32_143, %c0_i32_144] : memref<16x128xf32, #tpu.memory_space<vmem>> -> memref<1x128xf32, #tpu.memory_space<vmem>>
      %199 = tpu.memref_slice %arg11[%c10_i32_140] : memref<16x!tpu.dma_semaphore, #tpu.memory_space<semaphore_mem>> -> memref<1x!tpu.dma_semaphore, #tpu.memory_space<semaphore_mem>>
      %200 = tpu.memref_squeeze %199 : memref<1x!tpu.dma_semaphore, #tpu.memory_space<semaphore_mem>> -> memref<!tpu.dma_semaphore, #tpu.memory_space<semaphore_mem>>
      tpu.wait_dma2 semaphore(%200 : memref<!tpu.dma_semaphore, #tpu.memory_space<semaphore_mem>>) src(%197 : memref<1x128xf32, #tpu.memory_space<any>>) dst(%198 : memref<1x128xf32, #tpu.memory_space<vmem>>)
      %c11_i32_145 = arith.constant 11 : i32
      %c0_i32_146 = arith.constant 0 : i32
      %c0_i32_147 = arith.constant 0 : i32
      %201 = tpu.memref_slice %arg3[%c0_i32_146, %c0_i32_147] : memref<1000x128xf32, #tpu.memory_space<any>> -> memref<1x128xf32, #tpu.memory_space<any>>
      %c11_i32_148 = arith.constant 11 : i32
      %c0_i32_149 = arith.constant 0 : i32
      %202 = tpu.memref_slice %arg7[%c11_i32_148, %c0_i32_149] : memref<16x128xf32, #tpu.memory_space<vmem>> -> memref<1x128xf32, #tpu.memory_space<vmem>>
      %203 = tpu.memref_slice %arg11[%c11_i32_145] : memref<16x!tpu.dma_semaphore, #tpu.memory_space<semaphore_mem>> -> memref<1x!tpu.dma_semaphore, #tpu.memory_space<semaphore_mem>>
      %204 = tpu.memref_squeeze %203 : memref<1x!tpu.dma_semaphore, #tpu.memory_space<semaphore_mem>> -> memref<!tpu.dma_semaphore, #tpu.memory_space<semaphore_mem>>
      tpu.wait_dma2 semaphore(%204 : memref<!tpu.dma_semaphore, #tpu.memory_space<semaphore_mem>>) src(%201 : memref<1x128xf32, #tpu.memory_space<any>>) dst(%202 : memref<1x128xf32, #tpu.memory_space<vmem>>)
      %c12_i32_150 = arith.constant 12 : i32
      %c0_i32_151 = arith.constant 0 : i32
      %c0_i32_152 = arith.constant 0 : i32
      %205 = tpu.memref_slice %arg3[%c0_i32_151, %c0_i32_152] : memref<1000x128xf32, #tpu.memory_space<any>> -> memref<1x128xf32, #tpu.memory_space<any>>
      %c12_i32_153 = arith.constant 12 : i32
      %c0_i32_154 = arith.constant 0 : i32
      %206 = tpu.memref_slice %arg7[%c12_i32_153, %c0_i32_154] : memref<16x128xf32, #tpu.memory_space<vmem>> -> memref<1x128xf32, #tpu.memory_space<vmem>>
      %207 = tpu.memref_slice %arg11[%c12_i32_150] : memref<16x!tpu.dma_semaphore, #tpu.memory_space<semaphore_mem>> -> memref<1x!tpu.dma_semaphore, #tpu.memory_space<semaphore_mem>>
      %208 = tpu.memref_squeeze %207 : memref<1x!tpu.dma_semaphore, #tpu.memory_space<semaphore_mem>> -> memref<!tpu.dma_semaphore, #tpu.memory_space<semaphore_mem>>
      tpu.wait_dma2 semaphore(%208 : memref<!tpu.dma_semaphore, #tpu.memory_space<semaphore_mem>>) src(%205 : memref<1x128xf32, #tpu.memory_space<any>>) dst(%206 : memref<1x128xf32, #tpu.memory_space<vmem>>)
      %c13_i32_155 = arith.constant 13 : i32
      %c0_i32_156 = arith.constant 0 : i32
      %c0_i32_157 = arith.constant 0 : i32
      %209 = tpu.memref_slice %arg3[%c0_i32_156, %c0_i32_157] : memref<1000x128xf32, #tpu.memory_space<any>> -> memref<1x128xf32, #tpu.memory_space<any>>
      %c13_i32_158 = arith.constant 13 : i32
      %c0_i32_159 = arith.constant 0 : i32
      %210 = tpu.memref_slice %arg7[%c13_i32_158, %c0_i32_159] : memref<16x128xf32, #tpu.memory_space<vmem>> -> memref<1x128xf32, #tpu.memory_space<vmem>>
      %211 = tpu.memref_slice %arg11[%c13_i32_155] : memref<16x!tpu.dma_semaphore, #tpu.memory_space<semaphore_mem>> -> memref<1x!tpu.dma_semaphore, #tpu.memory_space<semaphore_mem>>
      %212 = tpu.memref_squeeze %211 : memref<1x!tpu.dma_semaphore, #tpu.memory_space<semaphore_mem>> -> memref<!tpu.dma_semaphore, #tpu.memory_space<semaphore_mem>>
      tpu.wait_dma2 semaphore(%212 : memref<!tpu.dma_semaphore, #tpu.memory_space<semaphore_mem>>) src(%209 : memref<1x128xf32, #tpu.memory_space<any>>) dst(%210 : memref<1x128xf32, #tpu.memory_space<vmem>>)
      %c14_i32_160 = arith.constant 14 : i32
      %c0_i32_161 = arith.constant 0 : i32
      %c0_i32_162 = arith.constant 0 : i32
      %213 = tpu.memref_slice %arg3[%c0_i32_161, %c0_i32_162] : memref<1000x128xf32, #tpu.memory_space<any>> -> memref<1x128xf32, #tpu.memory_space<any>>
      %c14_i32_163 = arith.constant 14 : i32
      %c0_i32_164 = arith.constant 0 : i32
      %214 = tpu.memref_slice %arg7[%c14_i32_163, %c0_i32_164] : memref<16x128xf32, #tpu.memory_space<vmem>> -> memref<1x128xf32, #tpu.memory_space<vmem>>
      %215 = tpu.memref_slice %arg11[%c14_i32_160] : memref<16x!tpu.dma_semaphore, #tpu.memory_space<semaphore_mem>> -> memref<1x!tpu.dma_semaphore, #tpu.memory_space<semaphore_mem>>
      %216 = tpu.memref_squeeze %215 : memref<1x!tpu.dma_semaphore, #tpu.memory_space<semaphore_mem>> -> memref<!tpu.dma_semaphore, #tpu.memory_space<semaphore_mem>>
      tpu.wait_dma2 semaphore(%216 : memref<!tpu.dma_semaphore, #tpu.memory_space<semaphore_mem>>) src(%213 : memref<1x128xf32, #tpu.memory_space<any>>) dst(%214 : memref<1x128xf32, #tpu.memory_space<vmem>>)
      %c15_i32_165 = arith.constant 15 : i32
      %c0_i32_166 = arith.constant 0 : i32
      %c0_i32_167 = arith.constant 0 : i32
      %217 = tpu.memref_slice %arg3[%c0_i32_166, %c0_i32_167] : memref<1000x128xf32, #tpu.memory_space<any>> -> memref<1x128xf32, #tpu.memory_space<any>>
      %c15_i32_168 = arith.constant 15 : i32
      %c0_i32_169 = arith.constant 0 : i32
      %218 = tpu.memref_slice %arg7[%c15_i32_168, %c0_i32_169] : memref<16x128xf32, #tpu.memory_space<vmem>> -> memref<1x128xf32, #tpu.memory_space<vmem>>
      %219 = tpu.memref_slice %arg11[%c15_i32_165] : memref<16x!tpu.dma_semaphore, #tpu.memory_space<semaphore_mem>> -> memref<1x!tpu.dma_semaphore, #tpu.memory_space<semaphore_mem>>
      %220 = tpu.memref_squeeze %219 : memref<1x!tpu.dma_semaphore, #tpu.memory_space<semaphore_mem>> -> memref<!tpu.dma_semaphore, #tpu.memory_space<semaphore_mem>>
      tpu.wait_dma2 semaphore(%220 : memref<!tpu.dma_semaphore, #tpu.memory_space<semaphore_mem>>) src(%217 : memref<1x128xf32, #tpu.memory_space<any>>) dst(%218 : memref<1x128xf32, #tpu.memory_space<vmem>>)
      %cst_170 = arith.constant -1.000000e+30 : f32
      %221 = vector.broadcast %cst_170 : f32 to vector<16x1xf32>
      %c0_171 = arith.constant 0 : index
      %c0_172 = arith.constant 0 : index
      %222 = vector.load %arg8[%c0_171, %c0_172] : memref<16x1xf32, #tpu.memory_space<vmem>>, vector<16x1xf32>
      tpu.vector_store %arg8[%c0_171, %c0_172], %221 {strides = array<i32>} : memref<16x1xf32, #tpu.memory_space<vmem>>, vector<16x1xf32>,
      %cst_173 = arith.constant 0.000000e+00 : f32
      %223 = vector.broadcast %cst_173 : f32 to vector<16x1xf32>
      %c0_174 = arith.constant 0 : index
      %c0_175 = arith.constant 0 : index
      %224 = vector.load %arg9[%c0_174, %c0_175] : memref<16x1xf32, #tpu.memory_space<vmem>>, vector<16x1xf32>
      tpu.vector_store %arg9[%c0_174, %c0_175], %223 {strides = array<i32>} : memref<16x1xf32, #tpu.memory_space<vmem>>, vector<16x1xf32>,
      %cst_176 = arith.constant 0.000000e+00 : f32
      %225 = vector.broadcast %cst_176 : f32 to vector<16x1xf32>
      %c0_177 = arith.constant 0 : index
      %c0_178 = arith.constant 0 : index
      %226 = vector.load %arg10[%c0_177, %c0_178] : memref<16x1xf32, #tpu.memory_space<vmem>>, vector<16x1xf32>
      tpu.vector_store %arg10[%c0_177, %c0_178], %225 {strides = array<i32>} : memref<16x1xf32, #tpu.memory_space<vmem>>, vector<16x1xf32>,
    } else {
    }
    %c0 = arith.constant 0 : index
    %c0_1 = arith.constant 0 : index
    %3 = vector.load %arg7[%c0, %c0_1] : memref<16x128xf32, #tpu.memory_space<vmem>>, vector<16x128xf32>
    %4 = arith.truncf %3 : vector<16x128xf32> to vector<16x128xbf16>
    %c0_2 = arith.constant 0 : index
    %c0_3 = arith.constant 0 : index
    %5 = vector.load %arg4[%c0_2, %c0_3] : memref<128x256xbf16, #tpu.memory_space<vmem>>, vector<128x256xbf16>
    %cst = arith.constant dense<0.000000e+00> : vector<16x256xf32>
    %6 = tpu.matmul %4, %5, %cst {dimension_numbers = #tpu.dot_dimension_numbers<[1], [0], [0], [1], [0, 0, 1, 1], [], []>} : vector<16x128xbf16>, vector<128x256xbf16>, vector<16x256xf32> -> vector<16x256xf32>
    %7 = tpu.iota {dimensions = array<i32: 1>} : vector<16x256xi32>
    %c256_i32 = arith.constant 256 : i32
    %8 = arith.muli %arg1, %c256_i32 : i32
    %9 = vector.broadcast %8 : i32 to vector<16x256xi32>
    %10 = arith.addi %7, %9 : vector<16x256xi32>
    %c1000_i32 = arith.constant 1000 : i32
    %11 = vector.broadcast %c1000_i32 : i32 to vector<16x256xi32>
    %12 = arith.cmpi slt, %10, %11 : vector<16x256xi32>
    %cst_4 = arith.constant -1.000000e+30 : f32
    %13 = vector.broadcast %cst_4 : f32 to vector<16x256xf32>
    %14 = arith.select %12, %6, %13 : vector<16x256xi1>, vector<16x256xf32>
    %c0_5 = arith.constant 0 : index
    %c0_6 = arith.constant 0 : index
    %15 = vector.load %arg8[%c0_5, %c0_6] : memref<16x1xf32, #tpu.memory_space<vmem>>, vector<16x1xf32>
    %cst_7 = arith.constant dense<0xFF800000> : vector<16xf32>
    %16 = vector.multi_reduction <maximumf>, %14, %cst_7 [1] : vector<16x256xf32> to vector<16xf32>
    %17 = vector.shape_cast %16 : vector<16xf32> to vector<16x1xf32>
    %18 = arith.maximumf %15, %17 : vector<16x1xf32>
    %19 = arith.subf %15, %18 : vector<16x1xf32>
    %20 = math.exp %19 : vector<16x1xf32>
    %c0_8 = arith.constant 0 : index
    %c0_9 = arith.constant 0 : index
    %21 = vector.load %arg9[%c0_8, %c0_9] : memref<16x1xf32, #tpu.memory_space<vmem>>, vector<16x1xf32>
    %22 = arith.mulf %21, %20 : vector<16x1xf32>
    %23 = vector.broadcast %18 : vector<16x1xf32> to vector<16x256xf32>
    %24 = arith.subf %14, %23 : vector<16x256xf32>
    %25 = math.exp %24 : vector<16x256xf32>
    %cst_10 = arith.constant dense<0.000000e+00> : vector<16xf32>
    %26 = vector.multi_reduction <add>, %25, %cst_10 [1] : vector<16x256xf32> to vector<16xf32>
    %27 = vector.shape_cast %26 : vector<16xf32> to vector<16x1xf32>
    %28 = arith.addf %22, %27 : vector<16x1xf32>
    %c0_11 = arith.constant 0 : index
    %c0_12 = arith.constant 0 : index
    %29 = vector.load %arg9[%c0_11, %c0_12] : memref<16x1xf32, #tpu.memory_space<vmem>>, vector<16x1xf32>
    tpu.vector_store %arg9[%c0_11, %c0_12], %28 {strides = array<i32>} : memref<16x1xf32, #tpu.memory_space<vmem>>, vector<16x1xf32>,
    %c0_13 = arith.constant 0 : index
    %c0_14 = arith.constant 0 : index
    %30 = vector.load %arg8[%c0_13, %c0_14] : memref<16x1xf32, #tpu.memory_space<vmem>>, vector<16x1xf32>
    tpu.vector_store %arg8[%c0_13, %c0_14], %18 {strides = array<i32>} : memref<16x1xf32, #tpu.memory_space<vmem>>, vector<16x1xf32>,
    %c0_15 = arith.constant 0 : index
    %c0_16 = arith.constant 0 : index
    %31 = vector.load %arg5[%c0_15, %c0_16] : memref<16x1xi32, #tpu.memory_space<vmem>>, vector<16x1xi32>
    %32 = vector.broadcast %31 : vector<16x1xi32> to vector<16x256xi32>
    %33 = arith.cmpi eq, %10, %32 : vector<16x256xi32>
    %c0_17 = arith.constant 0 : index
    %c0_18 = arith.constant 0 : index
    %34 = vector.load %arg10[%c0_17, %c0_18] : memref<16x1xf32, #tpu.memory_space<vmem>>, vector<16x1xf32>
    %cst_19 = arith.constant 0.000000e+00 : f32
    %35 = vector.broadcast %cst_19 : f32 to vector<16x256xf32>
    %36 = arith.select %33, %14, %35 : vector<16x256xi1>, vector<16x256xf32>
    %cst_20 = arith.constant dense<0.000000e+00> : vector<16xf32>
    %37 = vector.multi_reduction <add>, %36, %cst_20 [1] : vector<16x256xf32> to vector<16xf32>
    %38 = vector.shape_cast %37 : vector<16xf32> to vector<16x1xf32>
    %39 = arith.addf %34, %38 : vector<16x1xf32>
    %c0_21 = arith.constant 0 : index
    %c0_22 = arith.constant 0 : index
    %40 = vector.load %arg10[%c0_21, %c0_22] : memref<16x1xf32, #tpu.memory_space<vmem>>, vector<16x1xf32>
    tpu.vector_store %arg10[%c0_21, %c0_22], %39 {strides = array<i32>} : memref<16x1xf32, #tpu.memory_space<vmem>>, vector<16x1xf32>,
    %c3_i32 = arith.constant 3 : i32
    %41 = arith.cmpi eq, %arg1, %c3_i32 : i32
    %42 = arith.extui %41 : i1 to i32
    %c0_i32_23 = arith.constant 0 : i32
    %43 = arith.cmpi ne, %42, %c0_i32_23 : i32
    scf.if %43 {
      %c0_24 = arith.constant 0 : index
      %c0_25 = arith.constant 0 : index
      %44 = vector.load %arg8[%c0_24, %c0_25] : memref<16x1xf32, #tpu.memory_space<vmem>>, vector<16x1xf32>
      %c0_26 = arith.constant 0 : index
      %c0_27 = arith.constant 0 : index
      %45 = vector.load %arg9[%c0_26, %c0_27] : memref<16x1xf32, #tpu.memory_space<vmem>>, vector<16x1xf32>
      %46 = math.log %45 : vector<16x1xf32>
      %47 = arith.addf %44, %46 : vector<16x1xf32>
      %c0_28 = arith.constant 0 : index
      %c0_29 = arith.constant 0 : index
      %48 = vector.load %arg10[%c0_28, %c0_29] : memref<16x1xf32, #tpu.memory_space<vmem>>, vector<16x1xf32>
      %49 = arith.subf %47, %48 : vector<16x1xf32>
      %c0_30 = arith.constant 0 : index
      %c0_31 = arith.constant 0 : index
      %50 = vector.load %arg6[%c0_30, %c0_31] : memref<16x1xf32, #tpu.memory_space<vmem>>, vector<16x1xf32>
      tpu.vector_store %arg6[%c0_30, %c0_31], %49 {strides = array<i32>} : memref<16x1xf32, #tpu.memory_space<vmem>>, vector<16x1xf32>,
    } else {
    }
    return
  }
  func.func @transform_1(%arg0: i32, %arg1: i32, %arg2: memref<16xi32, #tpu.memory_space<smem>>) -> (i32, i32) {
    %c0_i32 = arith.constant 0 : i32
    %c0_i32_0 = arith.constant 0 : i32
    return %c0_i32, %arg1 : i32, i32
  }
  func.func @transform_2(%arg0: i32, %arg1: i32, %arg2: memref<16xi32, #tpu.memory_space<smem>>) -> (i32, i32) {
    %c0_i32 = arith.constant 0 : i32
    %c0_i32_0 = arith.constant 0 : i32
    return %arg0, %c0_i32 : i32, i32
  }
  func.func @transform_3(%arg0: i32, %arg1: i32, %arg2: memref<16xi32, #tpu.memory_space<smem>>) -> (i32, i32) {
    %c0_i32 = arith.constant 0 : i32
    %c0_i32_0 = arith.constant 0 : i32
    return %arg0, %c0_i32 : i32, i32
  }
}

</mosaic_0001>

<llo_original>
// kernel: tpu_custom_call.1
$region0: #{tpu_custom_call.1}
  #allocation0 [shape = 'u32[]', space=smem, size = 0x4, offset = 0x4, fixed_abs, tag = 'smem constant byte address 0x4 - core index']
  #allocation1 [shape = 'u32[144,128]{1,0:T(1,128)}', space=vmem, size = 0x12000, scoped, tag = 'internal scratch']
  #allocation2 [shape = 'f32[16,128]{1,0:T(8,128)}', space=vmem, size = 0x2000, scoped, tag = 'scratch operand']
  #allocation3 [shape = 'f32[16,1]{1,0:T(8,128)}', space=vmem, size = 0x2000, scoped, tag = 'scratch operand']
  #allocation4 [shape = 'f32[16,1]{1,0:T(8,128)}', space=vmem, size = 0x2000, scoped, tag = 'scratch operand']
  #allocation5 [shape = 'f32[16,1]{1,0:T(8,128)}', space=vmem, size = 0x2000, scoped, tag = 'scratch operand']
  #allocation6 [shape = 's32[16]{0}', space=sflag, size = 0x40, scoped, tag = 'scratch operand']
  #allocation7 [shape = 's32[1]{0}', space=sflag, size = 0x4, scoped, tag = 'scoped memory for tpu_custom_call.1']
  #allocation8 [shape = 'u8[512]{0}', space=smem, size = 0x200, scoped, tag = 'prefetched SMEM operand 0']
  #allocation15 [shape = 's32[]', space=sflag, size = 0x4, offset = 0, fixed_abs, tag = 'sflag constant byte address 0x0 - dummy sync flag']
  #allocation16 [shape = 's32[]', space=sflag, size = 0x4, offset = 0, fixed_abs, tag = 'sflag constant byte address 0x0 - dummy sync flag']
  #allocation17 [shape = 'u32[]', space=smem, size = 0x4, offset = 0x44, fixed_abs, tag = 'smem constant byte address 0x44 - assertion arg 0']
  #allocation18 [shape = 'u32[]', space=smem, size = 0x4, offset = 0x48, fixed_abs, tag = 'smem constant byte address 0x48 - assertion arg 1']
  #allocation19 [shape = 's32[]', space=sflag, size = 0x4, offset = 0, fixed_abs, tag = 'sflag constant byte address 0x0 - dummy sync flag']
  #allocation20 [shape = 's32[]', space=sflag, size = 0x4, offset = 0, fixed_abs, tag = 'sflag constant byte address 0x0 - dummy sync flag']
  #allocation21 [shape = 's32[]', space=sflag, size = 0x4, offset = 0, fixed_abs, tag = 'sflag constant byte address 0x0 - dummy sync flag']
  #allocation22 [shape = 's32[]', space=sflag, size = 0x4, offset = 0, fixed_abs, tag = 'sflag constant byte address 0x0 - dummy sync flag']
  #allocation23 [shape = 's32[]', space=sflag, size = 0x4, offset = 0, fixed_abs, tag = 'sflag constant byte address 0x0 - dummy sync flag']
  #allocation24 [shape = 's32[]', space=sflag, size = 0x4, offset = 0, fixed_abs, tag = 'sflag constant byte address 0x0 - dummy sync flag']
  #allocation25 [shape = 's32[]', space=sflag, size = 0x4, offset = 0, fixed_abs, tag = 'sflag constant byte address 0x0 - dummy sync flag']
  #allocation26 [shape = 's32[]', space=sflag, size = 0x4, offset = 0, fixed_abs, tag = 'sflag constant byte address 0x0 - dummy sync flag']
  #allocation27 [shape = 's32[]', space=sflag, size = 0x4, offset = 0, fixed_abs, tag = 'sflag constant byte address 0x0 - dummy sync flag']
  #allocation28 [shape = 's32[]', space=sflag, size = 0x4, offset = 0, fixed_abs, tag = 'sflag constant byte address 0x0 - dummy sync flag']
  #allocation29 [shape = 's32[]', space=sflag, size = 0x4, offset = 0, fixed_abs, tag = 'sflag constant byte address 0x0 - dummy sync flag']
  #allocation30 [shape = 's32[]', space=sflag, size = 0x4, offset = 0, fixed_abs, tag = 'sflag constant byte address 0x0 - dummy sync flag']
  #allocation31 [shape = 's32[]', space=sflag, size = 0x4, offset = 0, fixed_abs, tag = 'sflag constant byte address 0x0 - dummy sync flag']
  #allocation32 [shape = 's32[]', space=sflag, size = 0x4, offset = 0, fixed_abs, tag = 'sflag constant byte address 0x0 - dummy sync flag']
  #allocation33 [shape = 's32[]', space=sflag, size = 0x4, offset = 0, fixed_abs, tag = 'sflag constant byte address 0x0 - dummy sync flag']
  #allocation34 [shape = 's32[]', space=sflag, size = 0x4, offset = 0, fixed_abs, tag = 'sflag constant byte address 0x0 - dummy sync flag']
  #allocation35 [shape = 's32[]', space=sflag, size = 0x4, offset = 0, fixed_abs, tag = 'sflag constant byte address 0x0 - dummy sync flag']
  #allocation36 [shape = 's32[]', space=sflag, size = 0x4, offset = 0, fixed_abs, tag = 'sflag constant byte address 0x0 - dummy sync flag']
  #allocation37 [shape = 's32[]', space=sflag, size = 0x4, offset = 0, fixed_abs, tag = 'sflag constant byte address 0x0 - dummy sync flag']
  #allocation38 [shape = 's32[]', space=sflag, size = 0x4, offset = 0, fixed_abs, tag = 'sflag constant byte address 0x0 - dummy sync flag']
  #allocation39 [shape = 's32[]', space=sflag, size = 0x4, offset = 0, fixed_abs, tag = 'sflag constant byte address 0x0 - dummy sync flag']
  #allocation40 [shape = 's32[]', space=sflag, size = 0x4, offset = 0, fixed_abs, tag = 'sflag constant byte address 0x0 - dummy sync flag']
  #allocation41 [shape = 's32[]', space=sflag, size = 0x4, offset = 0, fixed_abs, tag = 'sflag constant byte address 0x0 - dummy sync flag']
  #allocation42 [shape = 's32[]', space=sflag, size = 0x4, offset = 0, fixed_abs, tag = 'sflag constant byte address 0x0 - dummy sync flag']
  #allocation43 [shape = 's32[]', space=sflag, size = 0x4, offset = 0, fixed_abs, tag = 'sflag constant byte address 0x0 - dummy sync flag']
  #allocation44 [shape = 's32[]', space=sflag, size = 0x4, offset = 0, fixed_abs, tag = 'sflag constant byte address 0x0 - dummy sync flag']
  #allocation45 [shape = 's32[]', space=sflag, size = 0x4, offset = 0, fixed_abs, tag = 'sflag constant byte address 0x0 - dummy sync flag']
  #allocation46 [shape = 's32[]', space=sflag, size = 0x4, offset = 0, fixed_abs, tag = 'sflag constant byte address 0x0 - dummy sync flag']
  #allocation47 [shape = 's32[]', space=sflag, size = 0x4, offset = 0, fixed_abs, tag = 'sflag constant byte address 0x0 - dummy sync flag']
  #allocation48 [shape = 's32[]', space=sflag, size = 0x4, offset = 0, fixed_abs, tag = 'sflag constant byte address 0x0 - dummy sync flag']
  %s0 = inlined_call_operand.hbm [shape: s32[16], index: 0, kind: input, shape index: {}]
  %s1 = inlined_call_operand.hbm [shape: f32[1000,128], index: 1, kind: input, shape index: {}]
  %s2 = inlined_call_operand.hbm [shape: bf16[128,1024], index: 2, kind: input, shape index: {}]
  %s3 = inlined_call_operand.hbm [shape: s32[16,1], index: 3, kind: input, shape index: {}]
  %s4 = inlined_call_operand.hbm [shape: f32[16,1], index: 4, kind: output, shape index: {}]
  %s5 = sld [smem:[#allocation0]]
  $region121: #{tpu_custom_call.1} parent=0
    _
  %s7 = ssub.s32 1, %s5
  %s8 = scalar_select 0, %s7, %s5
  %10 = dma.hbm_to_smem %s0, 16, [#allocation8], [#allocation7]
  %11 = dma.done [#allocation7], 16
  %12 = sfence
  $region1: #{tpu_custom_call.1} parent=0
    #allocation9 [shape = 'u8[131072]{0}', space=vmem, size = 0x20000, scoped, tag = 'input window, operand 2']
    #allocation10 [shape = 's32[2]{0}', space=sflag, size = 0x8, scoped, tag = 'scoped memory for tpu_custom_call.1']
    #allocation11 [shape = 's32[2]{0}', space=sflag, size = 0x8, scoped, tag = 'scoped memory for tpu_custom_call.1']
    #allocation12 [shape = 'u8[8192]{0}', space=vmem, size = 0x2000, scoped, tag = 'input window, operand 3, single buffered']
    #allocation13 [shape = 's32[1]{0}', space=sflag, size = 0x4, scoped, tag = 'scoped memory for tpu_custom_call.1']
    #allocation14 [shape = 'u8[8192]{0}', space=vmem, size = 0x2000, scoped, tag = 'output window, operand 0, single buffered']
    %13 = vsyncpa [#allocation10], 0
    %s14 = scalar_lea.sflag [#allocation10], 1
    %15 = vsyncpa %s14, 0
    %16 = vsyncpa [#allocation13], 0
    %17 = vsyncpa [#allocation11], 0
    loop: start=0, step=1, limit=6
    $region2: #{tpu_custom_call.1} parent=1 // loop_pre_header
      _
    $region3: #{tpu_custom_call.1} parent=1 // loop_header
      %s19 = sphi 0, %s23
      %p20 = scmp.ge.s32.totalorder %s19, 6
      %s26 = sphi 0, %s38
      %s27 = sphi 0, %s34
      %s28 = sphi 0, %s26
      %s29 = sphi 0, %s27
      %s30 = sphi 0, %s28
      %s31 = sphi 0, %s29
      %s41 = sphi 0, %s43
      %s44 = sphi 0, %s41
      %s45 = sphi 0, %s44
      %s61 = sphi 0, %s45
      %s67 = sphi 0, %s69
      %s70 = sphi 0, %s67
      %s71 = sphi 0, %s70
      %s87 = sphi 0, %s71
      %s93 = sphi 0, %s95
      %s96 = sphi 0, %s93
      %s97 = sphi 0, %s96
      %s113 = sphi 0, %s97
    $region4: #{tpu_custom_call.1} parent=1 // loop_header_branch
      %22 = sbr.rel (%p20) target = $region8
    $region5: #{tpu_custom_call.1} parent=1 // loop_body
      %s24 = ssub.s32 %s19, 1
      %s25 = ssub.s32 %s19, 2
      %s32 = sadd.s32 1, %s27
      %p33 = scmp.ge.s32.totalorder %s32, 4
      %s34 = scalar_select %p33, 0, %s32
      %s35 = sadd.s32 1, %s26
      %s36 = scalar_select %p33, %s35, %s26
      %p37 = scmp.ge.s32.totalorder %s36, 1
      %s38 = scalar_select %p37, 0, %s36
      %s39 = ssub.s32 %s27, %s34
      %p40 = scmp.eq.s32.totalorder %s39, 0
      %s42 = sadd.s32 %s41, 1
      %s43 = scalar_select %p40, %s41, %s42
      %p46 = pneg %p40
      %p47 = scmp.eq.s32.totalorder %s19, 3
      %p48 = por %p46, %p47
      %p49 = scmp.ne.s32.totalorder %s41, %s44
      %p50 = scmp.eq.s32.totalorder %s19, 0
      %p51 = por %p49, %p50
      %p52 = scmp.ne.s32.totalorder %s41, %s44
      %p53 = scmp.eq.s32.totalorder %s24, 3
      %p54 = por %p52, %p53
      %p55 = scmp.ne.s32.totalorder %s44, %s45
      %p56 = scmp.eq.s32.totalorder %s24, 0
      %p57 = por %p55, %p56
      %p58 = scmp.ne.s32.totalorder %s44, %s45
      %p59 = scmp.eq.s32.totalorder %s25, 3
      %p60 = por %p58, %p59
      %p62 = scmp.ne.s32.totalorder %s45, %s61
      %p63 = scmp.eq.s32.totalorder %s25, 0
      %p64 = por %p62, %p63
      %s65 = ssub.s32 %s26, %s38
      %p66 = scmp.eq.s32.totalorder %s65, 0
      %s68 = sadd.s32 %s67, 1
      %s69 = scalar_select %p66, %s67, %s68
      %p72 = pneg %p66
      %p73 = scmp.eq.s32.totalorder %s19, 3
      %p74 = por %p72, %p73
      %p75 = scmp.ne.s32.totalorder %s67, %s70
      %p76 = scmp.eq.s32.totalorder %s19, 0
      %p77 = por %p75, %p76
      %p78 = scmp.ne.s32.totalorder %s67, %s70
      %p79 = scmp.eq.s32.totalorder %s24, 3
      %p80 = por %p78, %p79
      %p81 = scmp.ne.s32.totalorder %s70, %s71
      %p82 = scmp.eq.s32.totalorder %s24, 0
      %p83 = por %p81, %p82
      %p84 = scmp.ne.s32.totalorder %s70, %s71
      %p85 = scmp.eq.s32.totalorder %s25, 3
      %p86 = por %p84, %p85
      %p88 = scmp.ne.s32.totalorder %s71, %s87
      %p89 = scmp.eq.s32.totalorder %s25, 0
      %p90 = por %p88, %p89
      %s91 = ssub.s32 %s26, %s38
      %p92 = scmp.eq.s32.totalorder %s91, 0
      %s94 = sadd.s32 %s93, 1
      %s95 = scalar_select %p92, %s93, %s94
      %p98 = pneg %p92
      %p99 = scmp.eq.s32.totalorder %s19, 3
      %p100 = por %p98, %p99
      %p101 = scmp.ne.s32.totalorder %s93, %s96
      %p102 = scmp.eq.s32.totalorder %s19, 0
      %p103 = por %p101, %p102
      %p104 = scmp.ne.s32.totalorder %s93, %s96
      %p105 = scmp.eq.s32.totalorder %s24, 3
      %p106 = por %p104, %p105
      %p107 = scmp.ne.s32.totalorder %s96, %s97
      %p108 = scmp.eq.s32.totalorder %s24, 0
      %p109 = por %p107, %p108
      %p110 = scmp.ne.s32.totalorder %s96, %s97
      %p111 = scmp.eq.s32.totalorder %s25, 3
      %p112 = por %p110, %p111
      %p114 = scmp.ne.s32.totalorder %s97, %s113
      %p115 = scmp.eq.s32.totalorder %s25, 0
      %p116 = por %p114, %p115
      %p117 = scmp.le.s32.totalorder 1, %s19
      %p118 = scmp.lt.s32.totalorder %s19, 5
      %p119 = pnand %p117, %p118
      %p120 = pneg %p119
      // Predicated region
      $region9: #{tpu_custom_call.1} parent=5 // pred_check
        _
      $region10: #{tpu_custom_call.1} parent=5 // pred_check_branch
        %122 = sbr.rel (%p119) target = $region12
      $region11: #{tpu_custom_call.1} parent=5 // pred_region
        %s123 = ssub.s32 %s19, 1
        // Predicated region
        $region13: #{tpu_custom_call.1} parent=11 // pred_check
          %p124 = pneg %p83
        $region14: #{tpu_custom_call.1} parent=11 // pred_check_branch
          %126 = sbr.rel (%p124) target = $region16
        $region15: #{tpu_custom_call.1} parent=11 // pred_region
          %s127 = smul.u32 2, %s28
          %s129 = ssub.s32 256, 256
          %130 = vsyncadd [#allocation13], %s129
          %s131 = smul.addr %s127, 128
          %s132 = scalar_lea.hbm %s3, %s131
          %s133 = sshll.u32 [#allocation12], 4
          %s134 = int_to_ptr.vmem [resolvable:$true] %s133
          %139 = dma.hbm_to_vmem [thread:$0]  %s132, 256, %s134, [#allocation13], 128, 128, 8
        $region16: #{tpu_custom_call.1} parent=11 // pred_fallthru
          _
      $region12: #{tpu_custom_call.1} parent=5 // pred_fallthru
        _
      %p140 = scmp.lt.s32.totalorder %s19, 4
      // Predicated region
      $region17: #{tpu_custom_call.1} parent=5 // pred_check
        %p141 = pneg %p140
      $region18: #{tpu_custom_call.1} parent=5 // pred_check_branch
        %143 = sbr.rel (%p141) target = $region20
      $region19: #{tpu_custom_call.1} parent=5 // pred_region
        // Predicated region
        $region21: #{tpu_custom_call.1} parent=19 // pred_check
          %p144 = pneg %p51
        $region22: #{tpu_custom_call.1} parent=19 // pred_check_branch
          %146 = sbr.rel (%p144) target = $region24
        $region23: #{tpu_custom_call.1} parent=19 // pred_region
          %s147 = sand.u32 %s41, 1
          %s148 = scalar_lea.sflag [#allocation10], %s147
          %s149 = sand.u32 %s41, 1
          %s150 = smul.addr %s149, 128
          %s151 = scalar_lea.vmem [#allocation9], %s150
          %s152 = smul.u32 2, %s27
          %s154 = ssub.s32 2048, 2048
          %155 = vsyncadd %s148, %s154
          %s156 = smul.addr %s152, 64
          %s157 = scalar_lea.hbm %s2, %s156
          %s158 = sshll.u32 %s151, 4
          %s159 = int_to_ptr.vmem [resolvable:$true] %s158
          %164 = dma.hbm_to_vmem [thread:$0]  %s157, 2048, %s159, %s148, 512, 128, 8
        $region24: #{tpu_custom_call.1} parent=19 // pred_fallthru
          _
      $region20: #{tpu_custom_call.1} parent=5 // pred_fallthru
        _
      %p165 = scmp.le.s32.totalorder 1, %s19
      %p166 = scmp.lt.s32.totalorder %s19, 5
      %p167 = pnand %p165, %p166
      %p168 = pneg %p167
      // Predicated region
      $region25: #{tpu_custom_call.1} parent=5 // pred_check
        _
      $region26: #{tpu_custom_call.1} parent=5 // pred_check_branch
        %170 = sbr.rel (%p167) target = $region28
      $region27: #{tpu_custom_call.1} parent=5 // pred_region
        %s171 = ssub.s32 %s19, 1
        %s172 = sand.u32 %s44, 1
        %s173 = scalar_lea.sflag [#allocation10], %s172
        %s174 = sand.u32 %s44, 1
        %s175 = smul.addr %s174, 128
        %s176 = scalar_lea.vmem [#allocation9], %s175
        // Predicated region
        $region29: #{tpu_custom_call.1} parent=27 // pred_check
          %p177 = pneg %p57
        $region30: #{tpu_custom_call.1} parent=27 // pred_check_branch
          %179 = sbr.rel (%p177) target = $region32
        $region31: #{tpu_custom_call.1} parent=27 // pred_region
          %180 = dma.done %s173, 2048
        $region32: #{tpu_custom_call.1} parent=27 // pred_fallthru
          _
        // Predicated region
        $region33: #{tpu_custom_call.1} parent=27 // pred_check
          %p181 = pneg %p83
        $region34: #{tpu_custom_call.1} parent=27 // pred_check_branch
          %183 = sbr.rel (%p181) target = $region36
        $region35: #{tpu_custom_call.1} parent=27 // pred_region
          %184 = dma.done [#allocation13], 256
        $region36: #{tpu_custom_call.1} parent=27 // pred_fallthru
          _
        %s185 = sand.u32 %s44, 1
        %s186 = scalar_lea.sflag [#allocation10], %s185
        %s187 = sand.u32 %s44, 1
        %s188 = smul.addr %s187, 128
        %s189 = scalar_lea.vmem [#allocation9], %s188
        %p190 = pneg %p57
        %p191 = pneg %p54
        %p192 = pneg %p83
        %p193 = pneg %p80
        %p194 = pneg %p109
        %p195 = pneg %p106
        %s196 = smul.u32 2, %s29
        %s197 = smul.u32 2, %s28
        %s198 = smul.u32 2, %s28
        %p200 = scmp.eq.s32.totalorder %s29, 0
        // Predicated region
        $region37: #{tpu_custom_call.1} parent=27 // pred_check
          %p201 = pneg %p200
        $region38: #{tpu_custom_call.1} parent=27 // pred_check_branch
          %203 = sbr.rel (%p201) target = $region40
        $region39: #{tpu_custom_call.1} parent=27 // pred_region
          %s204 = smul.u32 %s28, 16
          %s205 = sld [smem:[#allocation8 + %s204]]
          %s206 = smul.addr %s205, 16
          %s207 = scalar_lea.hbm %s1, %s206
          // Predicated region
          $region41: #{tpu_custom_call.1} parent=39 // pred_check
            _
          $region42: #{tpu_custom_call.1} parent=39 // pred_check_branch
            %209 = sbr.rel target = $region44
          $region43: #{tpu_custom_call.1} parent=39 // pred_region
            %210 = sst [smem:[#allocation17]] [#allocation16]
            %211 = sst [smem:[#allocation18]] [#allocation15]
          $region44: #{tpu_custom_call.1} parent=39 // pred_fallthru
            _
          %213 = shalt.err (0)
          %s215 = sshll.u32 [#allocation2], 4
          %s216 = int_to_ptr.vmem [resolvable:$true] %s215
          %218 = dma.hbm_to_vmem [thread:$0]  %s207, 16, %s216, [#allocation6]
          %s219 = sadd.s32 %s204, 1
          %s220 = sld [smem:[#allocation8 + %s219]]
          %s221 = smul.addr %s220, 16
          %s222 = scalar_lea.hbm %s1, %s221
          %s223 = scalar_lea.vmem [#allocation2], 1
          %s224 = scalar_lea.sflag [#allocation6], 1
          // Predicated region
          $region45: #{tpu_custom_call.1} parent=39 // pred_check
            _
          $region46: #{tpu_custom_call.1} parent=39 // pred_check_branch
            %226 = sbr.rel target = $region48
          $region47: #{tpu_custom_call.1} parent=39 // pred_region
            %227 = sst [smem:[#allocation17]] [#allocation20]
            %228 = sst [smem:[#allocation18]] [#allocation19]
          $region48: #{tpu_custom_call.1} parent=39 // pred_fallthru
            _
          %230 = shalt.err (0)
          %s232 = sshll.u32 %s223, 4
          %s233 = int_to_ptr.vmem [resolvable:$true] %s232
          %235 = dma.hbm_to_vmem [thread:$0]  %s222, 16, %s233, %s224
          %s236 = sadd.s32 %s204, 2
          %s237 = sld [smem:[#allocation8 + %s236]]
          %s238 = smul.addr %s237, 16
          %s239 = scalar_lea.hbm %s1, %s238
          %s240 = scalar_lea.vmem [#allocation2], 2
          %s241 = scalar_lea.sflag [#allocation6], 2
          // Predicated region
          $region49: #{tpu_custom_call.1} parent=39 // pred_check
            _
          $region50: #{tpu_custom_call.1} parent=39 // pred_check_branch
            %243 = sbr.rel target = $region52
          $region51: #{tpu_custom_call.1} parent=39 // pred_region
            %244 = sst [smem:[#allocation17]] [#allocation22]
            %245 = sst [smem:[#allocation18]] [#allocation21]
          $region52: #{tpu_custom_call.1} parent=39 // pred_fallthru
            _
          %247 = shalt.err (0)
          %s249 = sshll.u32 %s240, 4
          %s250 = int_to_ptr.vmem [resolvable:$true] %s249
          %252 = dma.hbm_to_vmem [thread:$0]  %s239, 16, %s250, %s241
          %s253 = sadd.s32 %s204, 3
          %s254 = sld [smem:[#allocation8 + %s253]]
          %s255 = smul.addr %s254, 16
          %s256 = scalar_lea.hbm %s1, %s255
          %s257 = scalar_lea.vmem [#allocation2], 3
          %s258 = scalar_lea.sflag [#allocation6], 3
          // Predicated region
          $region53: #{tpu_custom_call.1} parent=39 // pred_check
            _
          $region54: #{tpu_custom_call.1} parent=39 // pred_check_branch
            %260 = sbr.rel target = $region56
          $region55: #{tpu_custom_call.1} parent=39 // pred_region
            %261 = sst [smem:[#allocation17]] [#allocation24]
            %262 = sst [smem:[#allocation18]] [#allocation23]
          $region56: #{tpu_custom_call.1} parent=39 // pred_fallthru
            _
          %264 = shalt.err (0)
          %s266 = sshll.u32 %s257, 4
          %s267 = int_to_ptr.vmem [resolvable:$true] %s266
          %269 = dma.hbm_to_vmem [thread:$0]  %s256, 16, %s267, %s258
          %s270 = sadd.s32 %s204, 4
          %s271 = sld [smem:[#allocation8 + %s270]]
          %s272 = smul.addr %s271, 16
          %s273 = scalar_lea.hbm %s1, %s272
          %s274 = scalar_lea.vmem [#allocation2], 4
          %s275 = scalar_lea.sflag [#allocation6], 4
          // Predicated region
          $region57: #{tpu_custom_call.1} parent=39 // pred_check
            _
          $region58: #{tpu_custom_call.1} parent=39 // pred_check_branch
            %277 = sbr.rel target = $region60
          $region59: #{tpu_custom_call.1} parent=39 // pred_region
            %278 = sst [smem:[#allocation17]] [#allocation26]
            %279 = sst [smem:[#allocation18]] [#allocation25]
          $region60: #{tpu_custom_call.1} parent=39 // pred_fallthru
            _
          %281 = shalt.err (0)
          %s283 = sshll.u32 %s274, 4
          %s284 = int_to_ptr.vmem [resolvable:$true] %s283
          %286 = dma.hbm_to_vmem [thread:$0]  %s273, 16, %s284, %s275
          %s287 = sadd.s32 %s204, 5
          %s288 = sld [smem:[#allocation8 + %s287]]
          %s289 = smul.addr %s288, 16
          %s290 = scalar_lea.hbm %s1, %s289
          %s291 = scalar_lea.vmem [#allocation2], 5
          %s292 = scalar_lea.sflag [#allocation6], 5
          // Predicated region
          $region61: #{tpu_custom_call.1} parent=39 // pred_check
            _
          $region62: #{tpu_custom_call.1} parent=39 // pred_check_branch
            %294 = sbr.rel target = $region64
          $region63: #{tpu_custom_call.1} parent=39 // pred_region
            %295 = sst [smem:[#allocation17]] [#allocation28]
            %296 = sst [smem:[#allocation18]] [#allocation27]
          $region64: #{tpu_custom_call.1} parent=39 // pred_fallthru
            _
          %298 = shalt.err (0)
          %s300 = sshll.u32 %s291, 4
          %s301 = int_to_ptr.vmem [resolvable:$true] %s300
          %303 = dma.hbm_to_vmem [thread:$0]  %s290, 16, %s301, %s292
          %s304 = sadd.s32 %s204, 6
          %s305 = sld [smem:[#allocation8 + %s304]]
          %s306 = smul.addr %s305, 16
          %s307 = scalar_lea.hbm %s1, %s306
          %s308 = scalar_lea.vmem [#allocation2], 6
          %s309 = scalar_lea.sflag [#allocation6], 6
          // Predicated region
          $region65: #{tpu_custom_call.1} parent=39 // pred_check
            _
          $region66: #{tpu_custom_call.1} parent=39 // pred_check_branch
            %311 = sbr.rel target = $region68
          $region67: #{tpu_custom_call.1} parent=39 // pred_region
            %312 = sst [smem:[#allocation17]] [#allocation30]
            %313 = sst [smem:[#allocation18]] [#allocation29]
          $region68: #{tpu_custom_call.1} parent=39 // pred_fallthru
            _
          %315 = shalt.err (0)
          %s317 = sshll.u32 %s308, 4
          %s318 = int_to_ptr.vmem [resolvable:$true] %s317
          %320 = dma.hbm_to_vmem [thread:$0]  %s307, 16, %s318, %s309
          %s321 = sadd.s32 %s204, 7
          %s322 = sld [smem:[#allocation8 + %s321]]
          %s323 = smul.addr %s322, 16
          %s324 = scalar_lea.hbm %s1, %s323
          %s325 = scalar_lea.vmem [#allocation2], 7
          %s326 = scalar_lea.sflag [#allocation6], 7
          // Predicated region
          $region69: #{tpu_custom_call.1} parent=39 // pred_check
            _
          $region70: #{tpu_custom_call.1} parent=39 // pred_check_branch
            %328 = sbr.rel target = $region72
          $region71: #{tpu_custom_call.1} parent=39 // pred_region
            %329 = sst [smem:[#allocation17]] [#allocation32]
            %330 = sst [smem:[#allocation18]] [#allocation31]
          $region72: #{tpu_custom_call.1} parent=39 // pred_fallthru
            _
          %332 = shalt.err (0)
          %s334 = sshll.u32 %s325, 4
          %s335 = int_to_ptr.vmem [resolvable:$true] %s334
          %337 = dma.hbm_to_vmem [thread:$0]  %s324, 16, %s335, %s326
          %s338 = sadd.s32 %s204, 8
          %s339 = sld [smem:[#allocation8 + %s338]]
          %s340 = smul.addr %s339, 16
          %s341 = scalar_lea.hbm %s1, %s340
          %s342 = scalar_lea.vmem [#allocation2], 8
          %s343 = scalar_lea.sflag [#allocation6], 8
          // Predicated region
          $region73: #{tpu_custom_call.1} parent=39 // pred_check
            _
          $region74: #{tpu_custom_call.1} parent=39 // pred_check_branch
            %345 = sbr.rel target = $region76
          $region75: #{tpu_custom_call.1} parent=39 // pred_region
            %346 = sst [smem:[#allocation17]] [#allocation34]
            %347 = sst [smem:[#allocation18]] [#allocation33]
          $region76: #{tpu_custom_call.1} parent=39 // pred_fallthru
            _
          %349 = shalt.err (0)
          %s351 = sshll.u32 %s342, 4
          %s352 = int_to_ptr.vmem [resolvable:$true] %s351
          %354 = dma.hbm_to_vmem [thread:$0]  %s341, 16, %s352, %s343
          %s355 = sadd.s32 %s204, 9
          %s356 = sld [smem:[#allocation8 + %s355]]
          %s357 = smul.addr %s356, 16
          %s358 = scalar_lea.hbm %s1, %s357
          %s359 = scalar_lea.vmem [#allocation2], 9
          %s360 = scalar_lea.sflag [#allocation6], 9
          // Predicated region
          $region77: #{tpu_custom_call.1} parent=39 // pred_check
            _
          $region78: #{tpu_custom_call.1} parent=39 // pred_check_branch
            %362 = sbr.rel target = $region80
          $region79: #{tpu_custom_call.1} parent=39 // pred_region
            %363 = sst [smem:[#allocation17]] [#allocation36]
            %364 = sst [smem:[#allocation18]] [#allocation35]
          $region80: #{tpu_custom_call.1} parent=39 // pred_fallthru
            _
          %366 = shalt.err (0)
          %s368 = sshll.u32 %s359, 4
          %s369 = int_to_ptr.vmem [resolvable:$true] %s368
          %371 = dma.hbm_to_vmem [thread:$0]  %s358, 16, %s369, %s360
          %s372 = sadd.s32 %s204, 10
          %s373 = sld [smem:[#allocation8 + %s372]]
          %s374 = smul.addr %s373, 16
          %s375 = scalar_lea.hbm %s1, %s374
          %s376 = scalar_lea.vmem [#allocation2], 10
          %s377 = scalar_lea.sflag [#allocation6], 10
          // Predicated region
          $region81: #{tpu_custom_call.1} parent=39 // pred_check
            _
          $region82: #{tpu_custom_call.1} parent=39 // pred_check_branch
            %379 = sbr.rel target = $region84
          $region83: #{tpu_custom_call.1} parent=39 // pred_region
            %380 = sst [smem:[#allocation17]] [#allocation38]
            %381 = sst [smem:[#allocation18]] [#allocation37]
          $region84: #{tpu_custom_call.1} parent=39 // pred_fallthru
            _
          %383 = shalt.err (0)
          %s385 = sshll.u32 %s376, 4
          %s386 = int_to_ptr.vmem [resolvable:$true] %s385
          %388 = dma.hbm_to_vmem [thread:$0]  %s375, 16, %s386, %s377
          %s389 = sadd.s32 %s204, 11
          %s390 = sld [smem:[#allocation8 + %s389]]
          %s391 = smul.addr %s390, 16
          %s392 = scalar_lea.hbm %s1, %s391
          %s393 = scalar_lea.vmem [#allocation2], 11
          %s394 = scalar_lea.sflag [#allocation6], 11
          // Predicated region
          $region85: #{tpu_custom_call.1} parent=39 // pred_check
            _
          $region86: #{tpu_custom_call.1} parent=39 // pred_check_branch
            %396 = sbr.rel target = $region88
          $region87: #{tpu_custom_call.1} parent=39 // pred_region
            %397 = sst [smem:[#allocation17]] [#allocation40]
            %398 = sst [smem:[#allocation18]] [#allocation39]
          $region88: #{tpu_custom_call.1} parent=39 // pred_fallthru
            _
          %400 = shalt.err (0)
          %s402 = sshll.u32 %s393, 4
          %s403 = int_to_ptr.vmem [resolvable:$true] %s402
          %405 = dma.hbm_to_vmem [thread:$0]  %s392, 16, %s403, %s394
          %s406 = sadd.s32 %s204, 12
          %s407 = sld [smem:[#allocation8 + %s406]]
          %s408 = smul.addr %s407, 16
          %s409 = scalar_lea.hbm %s1, %s408
          %s410 = scalar_lea.vmem [#allocation2], 12
          %s411 = scalar_lea.sflag [#allocation6], 12
          // Predicated region
          $region89: #{tpu_custom_call.1} parent=39 // pred_check
            _
          $region90: #{tpu_custom_call.1} parent=39 // pred_check_branch
            %413 = sbr.rel target = $region92
          $region91: #{tpu_custom_call.1} parent=39 // pred_region
            %414 = sst [smem:[#allocation17]] [#allocation42]
            %415 = sst [smem:[#allocation18]] [#allocation41]
          $region92: #{tpu_custom_call.1} parent=39 // pred_fallthru
            _
          %417 = shalt.err (0)
          %s419 = sshll.u32 %s410, 4
          %s420 = int_to_ptr.vmem [resolvable:$true] %s419
          %422 = dma.hbm_to_vmem [thread:$0]  %s409, 16, %s420, %s411
          %s423 = sadd.s32 %s204, 13
          %s424 = sld [smem:[#allocation8 + %s423]]
          %s425 = smul.addr %s424, 16
          %s426 = scalar_lea.hbm %s1, %s425
          %s427 = scalar_lea.vmem [#allocation2], 13
          %s428 = scalar_lea.sflag [#allocation6], 13
          // Predicated region
          $region93: #{tpu_custom_call.1} parent=39 // pred_check
            _
          $region94: #{tpu_custom_call.1} parent=39 // pred_check_branch
            %430 = sbr.rel target = $region96
          $region95: #{tpu_custom_call.1} parent=39 // pred_region
            %431 = sst [smem:[#allocation17]] [#allocation44]
            %432 = sst [smem:[#allocation18]] [#allocation43]
          $region96: #{tpu_custom_call.1} parent=39 // pred_fallthru
            _
          %434 = shalt.err (0)
          %s436 = sshll.u32 %s427, 4
          %s437 = int_to_ptr.vmem [resolvable:$true] %s436
          %439 = dma.hbm_to_vmem [thread:$0]  %s426, 16, %s437, %s428
          %s440 = sadd.s32 %s204, 14
          %s441 = sld [smem:[#allocation8 + %s440]]
          %s442 = smul.addr %s441, 16
          %s443 = scalar_lea.hbm %s1, %s442
          %s444 = scalar_lea.vmem [#allocation2], 14
          %s445 = scalar_lea.sflag [#allocation6], 14
          // Predicated region
          $region97: #{tpu_custom_call.1} parent=39 // pred_check
            _
          $region98: #{tpu_custom_call.1} parent=39 // pred_check_branch
            %447 = sbr.rel target = $region100
          $region99: #{tpu_custom_call.1} parent=39 // pred_region
            %448 = sst [smem:[#allocation17]] [#allocation46]
            %449 = sst [smem:[#allocation18]] [#allocation45]
          $region100: #{tpu_custom_call.1} parent=39 // pred_fallthru
            _
          %451 = shalt.err (0)
          %s453 = sshll.u32 %s444, 4
          %s454 = int_to_ptr.vmem [resolvable:$true] %s453
          %456 = dma.hbm_to_vmem [thread:$0]  %s443, 16, %s454, %s445
          %s457 = sadd.s32 %s204, 15
          %s458 = sld [smem:[#allocation8 + %s457]]
          %s459 = smul.addr %s458, 16
          %s460 = scalar_lea.hbm %s1, %s459
          %s461 = scalar_lea.vmem [#allocation2], 15
          %s462 = scalar_lea.sflag [#allocation6], 15
          // Predicated region
          $region101: #{tpu_custom_call.1} parent=39 // pred_check
            _
          $region102: #{tpu_custom_call.1} parent=39 // pred_check_branch
            %464 = sbr.rel target = $region104
          $region103: #{tpu_custom_call.1} parent=39 // pred_region
            %465 = sst [smem:[#allocation17]] [#allocation48]
            %466 = sst [smem:[#allocation18]] [#allocation47]
          $region104: #{tpu_custom_call.1} parent=39 // pred_fallthru
            _
          %468 = shalt.err (0)
          %s470 = sshll.u32 %s461, 4
          %s471 = int_to_ptr.vmem [resolvable:$true] %s470
          %473 = dma.hbm_to_vmem [thread:$0]  %s460, 16, %s471, %s462
          %s474 = smul.u32 1, 1
          %s475 = sshll.u32 %s474, 4
          %476 = dma.done [#allocation6], %s475
          %s477 = sshll.u32 %s474, 4
          %478 = dma.done %s224, %s477
          %s479 = sshll.u32 %s474, 4
          %480 = dma.done %s241, %s479
          %s481 = sshll.u32 %s474, 4
          %482 = dma.done %s258, %s481
          %s483 = sshll.u32 %s474, 4
          %484 = dma.done %s275, %s483
          %s485 = sshll.u32 %s474, 4
          %486 = dma.done %s292, %s485
          %s487 = sshll.u32 %s474, 4
          %488 = dma.done %s309, %s487
          %s489 = sshll.u32 %s474, 4
          %490 = dma.done %s326, %s489
          %s491 = sshll.u32 %s474, 4
          %492 = dma.done %s343, %s491
          %s493 = sshll.u32 %s474, 4
          %494 = dma.done %s360, %s493
          %s495 = sshll.u32 %s474, 4
          %496 = dma.done %s377, %s495
          %s497 = sshll.u32 %s474, 4
          %498 = dma.done %s394, %s497
          %s499 = sshll.u32 %s474, 4
          %500 = dma.done %s411, %s499
          %s501 = sshll.u32 %s474, 4
          %502 = dma.done %s428, %s501
          %s503 = sshll.u32 %s474, 4
          %504 = dma.done %s445, %s503
          %s505 = sshll.u32 %s474, 4
          %506 = dma.done %s462, %s505
          %vm507 = vcmask 7168
          %508 = vst.msk [vmem:[#allocation3] sm:$0xff] %vm507, -1e+30
          %509 = vst.msk [vmem:[#allocation3 + $0x8] sm:$0xff] %vm507, -1e+30
          %510 = vst.msk [vmem:[#allocation4] sm:$0xff] %vm507, 0.0
          %511 = vst.msk [vmem:[#allocation4 + $0x8] sm:$0xff] %vm507, 0.0
          %512 = vst.msk [vmem:[#allocation5] sm:$0xff] %vm507, 0.0
          %513 = vst.msk [vmem:[#allocation5 + $0x8] sm:$0xff] %vm507, 0.0
        $region40: #{tpu_custom_call.1} parent=27 // pred_fallthru
          _
        %v514 = vld [vmem:[#allocation2] sm:$0xff]
        %v515 = vld [vmem:[#allocation2 + $0x8] sm:$0xff]
        %v516 = vpack.c.bf16 %v515, %v514
        %v517 = vld [vmem:[%s176] sm:$0xff]
        %v518 = vld [vmem:[%s176 + $0x8] sm:$0xff]
        %v519 = vld [vmem:[%s176 + $0x10] sm:$0xff]
        %v520 = vld [vmem:[%s176 + $0x18] sm:$0xff]
        %v521 = vld [vmem:[%s176 + $0x20] sm:$0xff]
        %v522 = vld [vmem:[%s176 + $0x28] sm:$0xff]
        %v523 = vld [vmem:[%s176 + $0x30] sm:$0xff]
        %v524 = vld [vmem:[%s176 + $0x38] sm:$0xff]
        %v525 = vld [vmem:[%s176 + $0x40] sm:$0xff]
        %v526 = vld [vmem:[%s176 + $0x48] sm:$0xff]
        %v527 = vld [vmem:[%s176 + $0x50] sm:$0xff]
        %v528 = vld [vmem:[%s176 + $0x58] sm:$0xff]
        %v529 = vld [vmem:[%s176 + $0x60] sm:$0xff]
        %v530 = vld [vmem:[%s176 + $0x68] sm:$0xff]
        %v531 = vld [vmem:[%s176 + $0x70] sm:$0xff]
        %v532 = vld [vmem:[%s176 + $0x78] sm:$0xff]
        %v549 = vunpack.c.l.b16 %v517
        %v550 = vunpack.c.h.b16 %v517
        %v551 = vunpack.c.l.b16 %v518
        %v552 = vunpack.c.h.b16 %v518
        %v553 = vunpack.c.l.b16 %v519
        %v554 = vunpack.c.h.b16 %v519
        %v555 = vunpack.c.l.b16 %v520
        %v556 = vunpack.c.h.b16 %v520
        %v557 = vunpack.c.l.b16 %v521
        %v558 = vunpack.c.h.b16 %v521
        %v559 = vunpack.c.l.b16 %v522
        %v560 = vunpack.c.h.b16 %v522
        %v561 = vunpack.c.l.b16 %v523
        %v562 = vunpack.c.h.b16 %v523
        %v563 = vunpack.c.l.b16 %v524
        %v564 = vunpack.c.h.b16 %v524
        %v565 = vunpack.c.l.b16 %v525
        %v566 = vunpack.c.h.b16 %v525
        %v567 = vunpack.c.l.b16 %v526
        %v568 = vunpack.c.h.b16 %v526
        %v569 = vunpack.c.l.b16 %v527
        %v570 = vunpack.c.h.b16 %v527
        %v571 = vunpack.c.l.b16 %v528
        %v572 = vunpack.c.h.b16 %v528
        %v573 = vunpack.c.l.b16 %v529
        %v574 = vunpack.c.h.b16 %v529
        %v575 = vunpack.c.l.b16 %v530
        %v576 = vunpack.c.h.b16 %v530
        %v577 = vunpack.c.l.b16 %v531
        %v578 = vunpack.c.h.b16 %v531
        %v579 = vunpack.c.l.b16 %v532
        %v580 = vunpack.c.h.b16 %v532
        %v581 = vpack.c.b16 %v551, %v549
        %v582 = vpack.c.b16 %v552, %v550
        %v583 = vpack.c.b16 %v555, %v553
        %v584 = vpack.c.b16 %v556, %v554
        %v585 = vpack.c.b16 %v559, %v557
        %v586 = vpack.c.b16 %v560, %v558
        %v587 = vpack.c.b16 %v563, %v561
        %v588 = vpack.c.b16 %v564, %v562
        %v589 = vpack.c.b16 %v567, %v565
        %v590 = vpack.c.b16 %v568, %v566
        %v591 = vpack.c.b16 %v571, %v569
        %v592 = vpack.c.b16 %v572, %v570
        %v593 = vpack.c.b16 %v575, %v573
        %v594 = vpack.c.b16 %v576, %v574
        %v595 = vpack.c.b16 %v579, %v577
        %v596 = vpack.c.b16 %v580, %v578
        %613 = vmatprep.subr.bf16.mxu0 %v582
        %614 = vmatpush1.bf16.msra.mxu0 %v581
        %615 = vmatprep.subr.bf16.mxu0 %v584
        %616 = vmatpush1.bf16.msra.mxu0 %v583
        %617 = vmatprep.subr.bf16.mxu0 %v586
        %618 = vmatpush1.bf16.msra.mxu0 %v585
        %619 = vmatprep.subr.bf16.mxu0 %v588
        %620 = vmatpush1.bf16.msra.mxu0 %v587
        %621 = vmatprep.subr.bf16.mxu0 %v590
        %622 = vmatpush1.bf16.msra.mxu0 %v589
        %623 = vmatprep.subr.bf16.mxu0 %v592
        %624 = vmatpush1.bf16.msra.mxu0 %v591
        %625 = vmatprep.subr.bf16.mxu0 %v594
        %626 = vmatpush1.bf16.msra.mxu0 %v593
        %627 = vmatprep.subr.bf16.mxu0 %v596
        %628 = vmatpush1.bf16.msra.mxu0 %v595
        %629 = vmatprep.subr.bf16.mxu0 0
        %630 = vmatpush1.bf16.msra.mxu0 0
        %631 = vmatprep.subr.bf16.mxu0 0
        %632 = vmatpush1.bf16.msra.mxu0 0
        %633 = vmatprep.subr.bf16.mxu0 0
        %634 = vmatpush1.bf16.msra.mxu0 0
        %635 = vmatprep.subr.bf16.mxu0 0
        %636 = vmatpush1.bf16.msra.mxu0 0
        %637 = vmatprep.subr.bf16.mxu0 0
        %638 = vmatpush1.bf16.msra.mxu0 0
        %639 = vmatprep.subr.bf16.mxu0 0
        %640 = vmatpush1.bf16.msra.mxu0 0
        %641 = vmatprep.subr.bf16.mxu0 0
        %642 = vmatpush1.bf16.msra.mxu0 0
        %643 = vmatprep.subr.bf16.mxu0 0
        %644 = vmatpush1.bf16.msra.mxu0 0
        %645 = vmatprep.mubr.bf16.mxu0 0
        %646 = vmatmul.mubr.bf16.gmra.mrb[0].mxu0 %v516
        %v647 = vpop.f32.mrb[0].mxu0
        %v648 = vadd.f32 0.0, %v647
        %v649 = vpop.f32.mrb[0].mxu0
        %v650 = vadd.f32 0.0, %v649
        %v651 = vpop.f32.mrb[0].mxu0
        %v652 = vadd.f32 0.0, %v651
        %v653 = vpop.f32.mrb[0].mxu0
        %v654 = vadd.f32 0.0, %v653
        %655 = vdwg.mxu0
        %v656 = vlaneseq
        %v657 = vand.u32 %v656, 127
        %v658 = vadd.s32 %v657, 128
        %s659 = smul.u32 %s29, 256
        %v660 = vstv %s659
        %v661 = vadd.s32 %v657, %v660
        %v662 = vadd.s32 %v658, %v660
        %vm663 = vcmp.lt.s32.totalorder %v661, 1000
        %vm664 = vcmp.lt.s32.totalorder %v662, 1000
        %v665 = vsel %vm663, %v648, -1e+30
        %v666 = vsel %vm664, %v650, -1e+30
        %v667 = vsel %vm663, %v652, -1e+30
        %v668 = vsel %vm664, %v654, -1e+30
        %v669 = vld [vmem:[#allocation3] sm:$0xff]
        %v670 = vld [vmem:[#allocation3 + $0x8] sm:$0xff]
        %v671 = vmax.f32 %v665, %v666
        %672 = vmax.xlane.f32.xlu0 %v671
        %v673 = vpop.xlane.xlu0 %672
        %v674 = vmax.f32 %v667, %v668
        %675 = vmax.xlane.f32.xlu0 %v674
        %v676 = vpop.xlane.xlu0 %675
        %v677 = vmax.f32 %v669, %v673
        %v678 = vmax.f32 %v670, %v676
        %v679 = vsub.f32 %v669, %v677
        %v680 = vsub.f32 %v670, %v678
        %v681 = vmul.f32 %v679, 1.442695
        %v682 = vpow.pop %v681
        %v683 = vmul.f32 %v680, 1.442695
        %v684 = vpow.pop %v683
        %v685 = vld [vmem:[#allocation4] sm:$0xff]
        %v686 = vld [vmem:[#allocation4 + $0x8] sm:$0xff]
        %v687 = vmul.f32 %v685, %v682
        %v688 = vmul.f32 %v686, %v684
        %690 = vset.pattern.permute.xlu0 0
        %691 = vperm.xlu0 %690, %v677
        %v692 = vpop.permute.xlu0 %691
        %695 = vset.pattern.permute.xlu0 0
        %696 = vperm.xlu0 %695, %v678
        %v697 = vpop.permute.xlu0 %696
        %v699 = vsub.f32 %v665, %v692
        %v700 = vsub.f32 %v666, %v692
        %v701 = vsub.f32 %v667, %v697
        %v702 = vsub.f32 %v668, %v697
        %v703 = vmul.f32 %v699, 1.442695
        %v704 = vpow.pop %v703
        %v705 = vmul.f32 %v700, 1.442695
        %v706 = vpow.pop %v705
        %v707 = vmul.f32 %v701, 1.442695
        %v708 = vpow.pop %v707
        %v709 = vmul.f32 %v702, 1.442695
        %v710 = vpow.pop %v709
        %v711 = vadd.f32 %v704, %v706
        %712 = vadd.xlane.f32.xlu0 %v711
        %v713 = vpop.xlane.xlu0 %712
        %v714 = vadd.f32 %v708, %v710
        %715 = vadd.xlane.f32.xlu0 %v714
        %v716 = vpop.xlane.xlu0 %715
        %v717 = vadd.f32 %v687, %v713
        %v718 = vadd.f32 %v688, %v716
        %vm719 = vcmask 7168
        %720 = vst.msk [vmem:[#allocation4] sm:$0xff] %vm719, %v717
        %721 = vst.msk [vmem:[#allocation4 + $0x8] sm:$0xff] %vm719, %v718
        %722 = vst.msk [vmem:[#allocation3] sm:$0xff] %vm719, %v677
        %723 = vst.msk [vmem:[#allocation3 + $0x8] sm:$0xff] %vm719, %v678
        %v724 = vld [vmem:[#allocation12] sm:$0xff]
        %v725 = vld [vmem:[#allocation12 + $0x8] sm:$0xff]
        %726 = vset.pattern.permute.xlu0 0
        %727 = vperm.xlu0 %726, %v724
        %v728 = vpop.permute.xlu0 %727
        %729 = vset.pattern.permute.xlu0 0
        %730 = vperm.xlu0 %729, %v725
        %v731 = vpop.permute.xlu0 %730
        %vm732 = vcmp.eq.s32.totalorder %v661, %v728
        %vm733 = vcmp.eq.s32.totalorder %v662, %v728
        %vm734 = vcmp.eq.s32.totalorder %v661, %v731
        %vm735 = vcmp.eq.s32.totalorder %v662, %v731
        %v736 = vld [vmem:[#allocation5] sm:$0xff]
        %v737 = vld [vmem:[#allocation5 + $0x8] sm:$0xff]
        %v738 = vsel %vm732, %v665, 0.0
        %v739 = vsel %vm733, %v666, 0.0
        %v740 = vsel %vm734, %v667, 0.0
        %v741 = vsel %vm735, %v668, 0.0
        %v742 = vadd.f32 %v738, %v739
        %743 = vadd.xlane.f32.xlu0 %v742
        %v744 = vpop.xlane.xlu0 %743
        %v745 = vadd.f32 %v740, %v741
        %746 = vadd.xlane.f32.xlu0 %v745
        %v747 = vpop.xlane.xlu0 %746
        %v748 = vadd.f32 %v736, %v744
        %v749 = vadd.f32 %v737, %v747
        %750 = vst.msk [vmem:[#allocation5] sm:$0xff] %vm719, %v748
        %751 = vst.msk [vmem:[#allocation5 + $0x8] sm:$0xff] %vm719, %v749
        %p752 = scmp.eq.s32.totalorder %s29, 3
        // Predicated region
        $region105: #{tpu_custom_call.1} parent=27 // pred_check
          %p753 = pneg %p752
        $region106: #{tpu_custom_call.1} parent=27 // pred_check_branch
          %755 = sbr.rel (%p753) target = $region108
        $region107: #{tpu_custom_call.1} parent=27 // pred_region
          %v756 = vld [vmem:[#allocation3] sm:$0xff]
          %v757 = vld [vmem:[#allocation3 + $0x8] sm:$0xff]
          %v758 = vld [vmem:[#allocation4] sm:$0xff]
          %v759 = vld [vmem:[#allocation4 + $0x8] sm:$0xff]
          %v760 = vlog2.pop %v758
          %v761 = vmul.f32 %v760, 0.6931472
          %v762 = vlog2.pop %v759
          %v763 = vmul.f32 %v762, 0.6931472
          %v764 = vadd.f32 %v756, %v761
          %v765 = vadd.f32 %v757, %v763
          %v766 = vld [vmem:[#allocation5] sm:$0xff]
          %v767 = vld [vmem:[#allocation5 + $0x8] sm:$0xff]
          %v768 = vsub.f32 %v764, %v766
          %v769 = vsub.f32 %v765, %v767
          %770 = vst.msk [vmem:[#allocation14] sm:$0xff] %vm719, %v768
          %771 = vst.msk [vmem:[#allocation14 + $0x8] sm:$0xff] %vm719, %v769
        $region108: #{tpu_custom_call.1} parent=27 // pred_fallthru
          _
        // Predicated region
        $region109: #{tpu_custom_call.1} parent=27 // pred_check
          %p772 = pneg %p106
        $region110: #{tpu_custom_call.1} parent=27 // pred_check_branch
          %774 = sbr.rel (%p772) target = $region112
        $region111: #{tpu_custom_call.1} parent=27 // pred_region
          %s775 = smul.u32 2, %s28
          %s777 = ssub.s32 256, 256
          %778 = vsyncadd [#allocation11], %s777
          %s779 = smul.addr %s775, 128
          %s780 = scalar_lea.hbm %s4, %s779
          %s781 = sshll.u32 [#allocation14], 4
          %s782 = int_to_ptr.vmem [resolvable:$true] %s781
          %787 = dma.vmem_to_hbm [thread:$0]  %s782, 256, %s780, [#allocation11], 128, 128, 8
        $region112: #{tpu_custom_call.1} parent=27 // pred_fallthru
          _
        // Predicated region
        $region113: #{tpu_custom_call.1} parent=27 // pred_check
          %p788 = pneg %p106
        $region114: #{tpu_custom_call.1} parent=27 // pred_check_branch
          %790 = sbr.rel (%p788) target = $region116
        $region115: #{tpu_custom_call.1} parent=27 // pred_region
          %791 = dma.done [#allocation11], 256
        $region116: #{tpu_custom_call.1} parent=27 // pred_fallthru
          _
      $region28: #{tpu_custom_call.1} parent=5 // pred_fallthru
        _
      %p792 = scmp.le.s32.totalorder 2, %s19
      // Predicated region
      $region117: #{tpu_custom_call.1} parent=5 // pred_check
        %p793 = pneg %p792
      $region118: #{tpu_custom_call.1} parent=5 // pred_check_branch
        %795 = sbr.rel (%p793) target = $region120
      $region119: #{tpu_custom_call.1} parent=5 // pred_region
        %s796 = ssub.s32 %s19, 2
      $region120: #{tpu_custom_call.1} parent=5 // pred_fallthru
        _
    $region6: #{tpu_custom_call.1} parent=1 // loop_footer
      %s23 = sadd.s32 1, %s19
    $region7: #{tpu_custom_call.1} parent=1 // loop_footer_branch
      %18 = sbr.rel target = $region3
    $region8: #{tpu_custom_call.1} parent=1 // loop_exit
      _
    %797 = vsyncpa [#allocation10], 1
    %s798 = scalar_lea.sflag [#allocation10], 1
    %799 = vsyncpa %s798, 1
    %800 = vsyncpa [#allocation13], 1
    %801 = vsyncpa [#allocation11], 1
    %s802 = scalar_lea.sflag [#allocation11], 1
    %803 = vsyncpa %s802, 1
  %804 = vsyncmov [#allocation6]
  %s805 = vpop.sfrf %804
  %p806 = scmp.eq.s32.totalorder %s805, 0
  %p807 = pneg %p806
  %809 = shalt.err (%p807)
  %s810 = scalar_lea.sflag [#allocation6], 1
  %811 = vsyncmov %s810
  %s812 = vpop.sfrf %811
  %p813 = scmp.eq.s32.totalorder %s812, 0
  %p814 = pneg %p813
  %816 = shalt.err (%p814)
  %s817 = scalar_lea.sflag [#allocation6], 2
  %818 = vsyncmov %s817
  %s819 = vpop.sfrf %818
  %p820 = scmp.eq.s32.totalorder %s819, 0
  %p821 = pneg %p820
  %823 = shalt.err (%p821)
  %s824 = scalar_lea.sflag [#allocation6], 3
  %825 = vsyncmov %s824
  %s826 = vpop.sfrf %825
  %p827 = scmp.eq.s32.totalorder %s826, 0
  %p828 = pneg %p827
  %830 = shalt.err (%p828)
  %s831 = scalar_lea.sflag [#allocation6], 4
  %832 = vsyncmov %s831
  %s833 = vpop.sfrf %832
  %p834 = scmp.eq.s32.totalorder %s833, 0
  %p835 = pneg %p834
  %837 = shalt.err (%p835)
  %s838 = scalar_lea.sflag [#allocation6], 5
  %839 = vsyncmov %s838
  %s840 = vpop.sfrf %839
  %p841 = scmp.eq.s32.totalorder %s840, 0
  %p842 = pneg %p841
  %844 = shalt.err (%p842)
  %s845 = scalar_lea.sflag [#allocation6], 6
  %846 = vsyncmov %s845
  %s847 = vpop.sfrf %846
  %p848 = scmp.eq.s32.totalorder %s847, 0
  %p849 = pneg %p848
  %851 = shalt.err (%p849)
  %s852 = scalar_lea.sflag [#allocation6], 7
  %853 = vsyncmov %s852
  %s854 = vpop.sfrf %853
  %p855 = scmp.eq.s32.totalorder %s854, 0
  %p856 = pneg %p855
  %858 = shalt.err (%p856)
  %s859 = scalar_lea.sflag [#allocation6], 8
  %860 = vsyncmov %s859
  %s861 = vpop.sfrf %860
  %p862 = scmp.eq.s32.totalorder %s861, 0
  %p863 = pneg %p862
  %865 = shalt.err (%p863)
  %s866 = scalar_lea.sflag [#allocation6], 9
  %867 = vsyncmov %s866
  %s868 = vpop.sfrf %867
  %p869 = scmp.eq.s32.totalorder %s868, 0
  %p870 = pneg %p869
  %872 = shalt.err (%p870)
  %s873 = scalar_lea.sflag [#allocation6], 10
  %874 = vsyncmov %s873
  %s875 = vpop.sfrf %874
  %p876 = scmp.eq.s32.totalorder %s875, 0
  %p877 = pneg %p876
  %879 = shalt.err (%p877)
  %s880 = scalar_lea.sflag [#allocation6], 11
  %881 = vsyncmov %s880
  %s882 = vpop.sfrf %881
  %p883 = scmp.eq.s32.totalorder %s882, 0
  %p884 = pneg %p883
  %886 = shalt.err (%p884)
  %s887 = scalar_lea.sflag [#allocation6], 12
  %888 = vsyncmov %s887
  %s889 = vpop.sfrf %888
  %p890 = scmp.eq.s32.totalorder %s889, 0
  %p891 = pneg %p890
  %893 = shalt.err (%p891)
  %s894 = scalar_lea.sflag [#allocation6], 13
  %895 = vsyncmov %s894
  %s896 = vpop.sfrf %895
  %p897 = scmp.eq.s32.totalorder %s896, 0
  %p898 = pneg %p897
  %900 = shalt.err (%p898)
  %s901 = scalar_lea.sflag [#allocation6], 14
  %902 = vsyncmov %s901
  %s903 = vpop.sfrf %902
  %p904 = scmp.eq.s32.totalorder %s903, 0
  %p905 = pneg %p904
  %907 = shalt.err (%p905)
  %s908 = scalar_lea.sflag [#allocation6], 15
  %909 = vsyncmov %s908
  %s910 = vpop.sfrf %909
  %p911 = scmp.eq.s32.totalorder %s910, 0
  %p912 = pneg %p911
  %914 = shalt.err (%p912)

</llo_original>
